<compile_context>
chip_gen: v6e
topology: v6e:2x2x1
jax: 0.10.0
libtpu: 0.0.40
codegen_flags: <defaults>
</compile_context>

<pallas_src>
import jax
import jax.numpy as jnp
from jax.experimental import pallas as pl
from jax.experimental.pallas import tpu as pltpu

NUM_LAYERS = 10
HIDDEN = 64


def mlp_kernel(x_ref, w0_ref, b0_ref, w_ref, b_ref, wl_ref, bl_ref, o_ref):
    # x_ref : (1, TB)  f32   -- batch on lanes
    # w0_ref: (64, 1)  f32   -- PyTorch first.weight
    # b0_ref: (64, 1)  f32
    # w_ref : (10, 64, 64) bf16 -- PyTorch (out, in) orientation
    # b_ref : (10, 64, 1)  f32
    # wl_ref: (1, 64)  bf16  -- PyTorch last.weight
    # bl_ref: (1, 1)   f32   -- SMEM scalar
    # o_ref : (1, TB)  f32
    x = x_ref[...]                                                  # (1, TB)

    # First layer: Linear(1,64) is a degenerate K=1 matmul -> do it on the VPU
    # as a broadcast outer product, keep it in f32 (v5e VPU has no bf16).
    h = jnp.maximum(w0_ref[...] * x + b0_ref[...], 0.0)             # (64, TB) f32

    # 10 hidden layers, statically unrolled. Full-width MXU matmuls:
    # [64,64] (bf16) @ [64,TB] (bf16) -> f32 accumulation; bias + ReLU in f32.
    for i in range(NUM_LAYERS):
        z = jnp.dot(w_ref[i], h.astype(jnp.bfloat16),
                    preferred_element_type=jnp.float32)             # (64, TB) f32
        h = jnp.maximum(z + b_ref[i], 0.0)

    # Last layer: in the transposed layout this is a [1,64] @ [64,TB] matmul
    # with a fully occupied lane/N dimension.
    out = jnp.dot(wl_ref[...], h.astype(jnp.bfloat16),
                  preferred_element_type=jnp.float32)               # (1, TB) f32
    o_ref[...] = (out + bl_ref[0, 0]).astype(o_ref.dtype)


def traditional_net_forward(x, params, *, tile_b=256):
    """x: (B, 1) float32 -> (B, 1) float32.

    tile_b defaults to 256 (multiple of 128 for v5e MXU passes, multiple of 256
    for full v6e/v7x column occupancy). The batch is zero-padded up to a
    multiple of tile_b, so any batch size works.
    """
    w0, b0, w, b, wl, bl = params
    B = x.shape[0]
    n_steps = pl.cdiv(B, tile_b)
    b_pad = n_steps * tile_b

    # Transpose to batch-on-lanes layout and pad the batch (lane) dimension.
    x_t = jnp.pad(x.astype(jnp.float32).T, ((0, 0), (0, b_pad - B)))  # (1, b_pad)

    # Kernel-layout parameters (weights in PyTorch (out,in) orientation).
    w0_k = w0.astype(jnp.float32)                                   # (64, 1)
    b0_k = b0.reshape(HIDDEN, 1).astype(jnp.float32)                # (64, 1)
    w_k = w.astype(jnp.bfloat16)                                    # (10, 64, 64)
    b_k = b.reshape(NUM_LAYERS, HIDDEN, 1).astype(jnp.float32)      # (10, 64, 1)
    wl_k = wl.astype(jnp.bfloat16)                                  # (1, 64)
    bl_k = bl.reshape(1, 1).astype(jnp.float32)                     # (1, 1) -> SMEM

    def const_spec(arr):
        nd = arr.ndim
        # full-array block, same block every grid step -> stays resident in VMEM
        return pl.BlockSpec(arr.shape, lambda i, _nd=nd: (0,) * _nd)

    out_t = pl.pallas_call(
        mlp_kernel,
        out_shape=jax.ShapeDtypeStruct((1, b_pad), jnp.float32),
        grid_spec=pltpu.PrefetchScalarGridSpec(
            num_scalar_prefetch=0,
            grid=(n_steps,),
            in_specs=[
                pl.BlockSpec((1, tile_b), lambda i: (0, i)),        # x tile (lane-dense)
                const_spec(w0_k),
                const_spec(b0_k),
                const_spec(w_k),
                const_spec(b_k),
                const_spec(wl_k),
                pl.BlockSpec(memory_space=pltpu.MemorySpace.SMEM),  # scalar bias
            ],
            out_specs=pl.BlockSpec((1, tile_b), lambda i: (0, i)),  # lane-dense output
        ),
        compiler_params=pltpu.CompilerParams(
            dimension_semantics=("parallel",),
        ),
    )(x_t, w0_k, b0_k, w_k, b_k, wl_k, bl_k)

    return out_t[0, :B].reshape(B, 1)


def init_params(key):
    """Deterministic PyTorch-style init, PyTorch (out_features, in_features) layout."""
    ks = jax.random.split(key, 6)
    bound0 = 1.0  # 1/sqrt(in_features=1)
    w0 = jax.random.uniform(ks[0], (HIDDEN, 1), jnp.float32, -bound0, bound0)
    b0 = jax.random.uniform(ks[1], (HIDDEN,), jnp.float32, -bound0, bound0)
    boundh = 1.0 / jnp.sqrt(float(HIDDEN))
    w = jax.random.uniform(ks[2], (NUM_LAYERS, HIDDEN, HIDDEN), jnp.float32,
                           -boundh, boundh)
    b = jax.random.uniform(ks[3], (NUM_LAYERS, HIDDEN), jnp.float32,
                           -boundh, boundh)
    wl = jax.random.uniform(ks[4], (1, HIDDEN), jnp.float32, -boundh, boundh)
    bl = jax.random.uniform(ks[5], (1,), jnp.float32, -boundh, boundh)
    return w0, b0, w, b, wl, bl


def reference_forward_f32(x, params):
    """Pure-JAX f32 reference (matches the PyTorch module semantics)."""
    w0, b0, w, b, wl, bl = params
    h = jnp.maximum(x @ w0.T + b0, 0.0)
    for i in range(NUM_LAYERS):
        h = jnp.maximum(h @ w[i].T + b[i], 0.0)
    return h @ wl.T + bl


def reference_forward_bf16(x, params):
    """Pure-JAX reference that mirrors the kernel's bf16-MXU / f32-accumulate math."""
    w0, b0, w, b, wl, bl = params
    h = jnp.maximum(x @ w0.T + b0, 0.0)  # first layer is f32 in the kernel too
    for i in range(NUM_LAYERS):
        z = jnp.dot(h.astype(jnp.bfloat16), w[i].astype(jnp.bfloat16).T,
                    preferred_element_type=jnp.float32)
        h = jnp.maximum(z + b[i], 0.0)
    out = jnp.dot(h.astype(jnp.bfloat16), wl.astype(jnp.bfloat16).T,
                  preferred_element_type=jnp.float32)
    return out + bl


if __name__ == "__main__":
    key = jax.random.PRNGKey(0)
    pkey, xkey = jax.random.split(key)
    params = init_params(pkey)

    # Batch deliberately NOT a multiple of tile_b: exercises the padding path,
    # pads 384 -> 512 and gives a 2-step grid (keeps both v7x TensorCores busy).
    batch = 384
    x = jax.random.normal(xkey, (batch, 1), jnp.float32)

    out = jax.block_until_ready(traditional_net_forward(x, params, tile_b=256))
    assert out.shape == (batch, 1)

    # Tight check against a reference that emulates the kernel's bf16 matmul math.
    ref_bf16 = reference_forward_bf16(x, params)
    assert jnp.allclose(out, ref_bf16, atol=1e-3, rtol=1e-3), "mismatch vs bf16 reference"

    # Loose check against the full-f32 reference (bf16 MXU rounding only).
    ref_f32 = reference_forward_f32(x, params)
    assert jnp.allclose(out, ref_f32, atol=5e-2, rtol=5e-2), "mismatch vs f32 reference"

    print("KERNEL_OK")
</pallas_src>

<mosaic_0001>
module attributes {stable_mosaic.version = 11 : i64} {
  func.func @mlp_kernel(%arg0: i32, %arg1: memref<1x256xf32, #tpu.memory_space<vmem>>, %arg2: memref<64x1xf32, #tpu.memory_space<vmem>>, %arg3: memref<64x1xf32, #tpu.memory_space<vmem>>, %arg4: memref<10x64x64xbf16, #tpu.memory_space<vmem>>, %arg5: memref<10x64x1xf32, #tpu.memory_space<vmem>>, %arg6: memref<1x64xbf16, #tpu.memory_space<vmem>>, %arg7: memref<1x1xf32, #tpu.memory_space<smem>>, %arg8: memref<1x256xf32, #tpu.memory_space<vmem>>) attributes {dimension_semantics = [#tpu.dimension_semantics<parallel>], iteration_bounds = array<i64: 2>, scalar_prefetch = 0 : i64, scratch_operands = 0 : i64, tpu.core_type = #tpu.core_type<tc>, window_params = [{transform_indices = @transform_0, window_bounds = array<i64: 1, 256>}, {pipeline_mode = #tpu.pipeline_mode<synchronous>, transform_indices = @transform_1, window_bounds = array<i64: 64, 1>}, {pipeline_mode = #tpu.pipeline_mode<synchronous>, transform_indices = @transform_2, window_bounds = array<i64: 64, 1>}, {pipeline_mode = #tpu.pipeline_mode<synchronous>, transform_indices = @transform_3, window_bounds = array<i64: 10, 64, 64>}, {pipeline_mode = #tpu.pipeline_mode<synchronous>, transform_indices = @transform_4, window_bounds = array<i64: 10, 64, 1>}, {pipeline_mode = #tpu.pipeline_mode<synchronous>, transform_indices = @transform_5, window_bounds = array<i64: 1, 64>}, {transform_indices = @transform_6, window_bounds = array<i64: 1, 1>}, {transform_indices = @transform_7, window_bounds = array<i64: 1, 256>}]} {
    %c0 = arith.constant 0 : index
    %c0_0 = arith.constant 0 : index
    %0 = vector.load %arg1[%c0, %c0_0] : memref<1x256xf32, #tpu.memory_space<vmem>>, vector<1x256xf32>
    %c0_1 = arith.constant 0 : index
    %c0_2 = arith.constant 0 : index
    %1 = vector.load %arg2[%c0_1, %c0_2] : memref<64x1xf32, #tpu.memory_space<vmem>>, vector<64x1xf32>
    %2 = vector.broadcast %1 : vector<64x1xf32> to vector<64x256xf32>
    %3 = vector.broadcast %0 : vector<1x256xf32> to vector<64x256xf32>
    %4 = arith.mulf %2, %3 : vector<64x256xf32>
    %c0_3 = arith.constant 0 : index
    %c0_4 = arith.constant 0 : index
    %5 = vector.load %arg3[%c0_3, %c0_4] : memref<64x1xf32, #tpu.memory_space<vmem>>, vector<64x1xf32>
    %6 = vector.broadcast %5 : vector<64x1xf32> to vector<64x256xf32>
    %7 = arith.addf %4, %6 : vector<64x256xf32>
    %cst = arith.constant 0.000000e+00 : f32
    %8 = vector.broadcast %cst : f32 to vector<64x256xf32>
    %9 = arith.maximumf %7, %8 : vector<64x256xf32>
    %c0_5 = arith.constant 0 : index
    %c0_6 = arith.constant 0 : index
    %c0_7 = arith.constant 0 : index
    %10 = vector.load %arg4[%c0_5, %c0_6, %c0_7] : memref<10x64x64xbf16, #tpu.memory_space<vmem>>, vector<1x64x64xbf16>
    %11 = vector.shape_cast %10 : vector<1x64x64xbf16> to vector<64x64xbf16>
    %12 = arith.truncf %9 : vector<64x256xf32> to vector<64x256xbf16>
    %cst_8 = arith.constant dense<0.000000e+00> : vector<64x256xf32>
    %13 = tpu.matmul %11, %12, %cst_8 {dimension_numbers = #tpu.dot_dimension_numbers<[1], [0], [0], [1], [0, 0, 1, 1], [], []>} : vector<64x64xbf16>, vector<64x256xbf16>, vector<64x256xf32> -> vector<64x256xf32>
    %c0_9 = arith.constant 0 : index
    %c0_10 = arith.constant 0 : index
    %c0_11 = arith.constant 0 : index
    %14 = vector.load %arg5[%c0_9, %c0_10, %c0_11] : memref<10x64x1xf32, #tpu.memory_space<vmem>>, vector<1x64x1xf32>
    %15 = vector.shape_cast %14 : vector<1x64x1xf32> to vector<64x1xf32>
    %16 = vector.broadcast %15 : vector<64x1xf32> to vector<64x256xf32>
    %17 = arith.addf %13, %16 : vector<64x256xf32>
    %cst_12 = arith.constant 0.000000e+00 : f32
    %18 = vector.broadcast %cst_12 : f32 to vector<64x256xf32>
    %19 = arith.maximumf %17, %18 : vector<64x256xf32>
    %c1 = arith.constant 1 : index
    %c0_13 = arith.constant 0 : index
    %c0_14 = arith.constant 0 : index
    %20 = vector.load %arg4[%c1, %c0_13, %c0_14] : memref<10x64x64xbf16, #tpu.memory_space<vmem>>, vector<1x64x64xbf16>
    %21 = vector.shape_cast %20 : vector<1x64x64xbf16> to vector<64x64xbf16>
    %22 = arith.truncf %19 : vector<64x256xf32> to vector<64x256xbf16>
    %cst_15 = arith.constant dense<0.000000e+00> : vector<64x256xf32>
    %23 = tpu.matmul %21, %22, %cst_15 {dimension_numbers = #tpu.dot_dimension_numbers<[1], [0], [0], [1], [0, 0, 1, 1], [], []>} : vector<64x64xbf16>, vector<64x256xbf16>, vector<64x256xf32> -> vector<64x256xf32>
    %c1_16 = arith.constant 1 : index
    %c0_17 = arith.constant 0 : index
    %c0_18 = arith.constant 0 : index
    %24 = vector.load %arg5[%c1_16, %c0_17, %c0_18] : memref<10x64x1xf32, #tpu.memory_space<vmem>>, vector<1x64x1xf32>
    %25 = vector.shape_cast %24 : vector<1x64x1xf32> to vector<64x1xf32>
    %26 = vector.broadcast %25 : vector<64x1xf32> to vector<64x256xf32>
    %27 = arith.addf %23, %26 : vector<64x256xf32>
    %cst_19 = arith.constant 0.000000e+00 : f32
    %28 = vector.broadcast %cst_19 : f32 to vector<64x256xf32>
    %29 = arith.maximumf %27, %28 : vector<64x256xf32>
    %c2 = arith.constant 2 : index
    %c0_20 = arith.constant 0 : index
    %c0_21 = arith.constant 0 : index
    %30 = vector.load %arg4[%c2, %c0_20, %c0_21] : memref<10x64x64xbf16, #tpu.memory_space<vmem>>, vector<1x64x64xbf16>
    %31 = vector.shape_cast %30 : vector<1x64x64xbf16> to vector<64x64xbf16>
    %32 = arith.truncf %29 : vector<64x256xf32> to vector<64x256xbf16>
    %cst_22 = arith.constant dense<0.000000e+00> : vector<64x256xf32>
    %33 = tpu.matmul %31, %32, %cst_22 {dimension_numbers = #tpu.dot_dimension_numbers<[1], [0], [0], [1], [0, 0, 1, 1], [], []>} : vector<64x64xbf16>, vector<64x256xbf16>, vector<64x256xf32> -> vector<64x256xf32>
    %c2_23 = arith.constant 2 : index
    %c0_24 = arith.constant 0 : index
    %c0_25 = arith.constant 0 : index
    %34 = vector.load %arg5[%c2_23, %c0_24, %c0_25] : memref<10x64x1xf32, #tpu.memory_space<vmem>>, vector<1x64x1xf32>
    %35 = vector.shape_cast %34 : vector<1x64x1xf32> to vector<64x1xf32>
    %36 = vector.broadcast %35 : vector<64x1xf32> to vector<64x256xf32>
    %37 = arith.addf %33, %36 : vector<64x256xf32>
    %cst_26 = arith.constant 0.000000e+00 : f32
    %38 = vector.broadcast %cst_26 : f32 to vector<64x256xf32>
    %39 = arith.maximumf %37, %38 : vector<64x256xf32>
    %c3 = arith.constant 3 : index
    %c0_27 = arith.constant 0 : index
    %c0_28 = arith.constant 0 : index
    %40 = vector.load %arg4[%c3, %c0_27, %c0_28] : memref<10x64x64xbf16, #tpu.memory_space<vmem>>, vector<1x64x64xbf16>
    %41 = vector.shape_cast %40 : vector<1x64x64xbf16> to vector<64x64xbf16>
    %42 = arith.truncf %39 : vector<64x256xf32> to vector<64x256xbf16>
    %cst_29 = arith.constant dense<0.000000e+00> : vector<64x256xf32>
    %43 = tpu.matmul %41, %42, %cst_29 {dimension_numbers = #tpu.dot_dimension_numbers<[1], [0], [0], [1], [0, 0, 1, 1], [], []>} : vector<64x64xbf16>, vector<64x256xbf16>, vector<64x256xf32> -> vector<64x256xf32>
    %c3_30 = arith.constant 3 : index
    %c0_31 = arith.constant 0 : index
    %c0_32 = arith.constant 0 : index
    %44 = vector.load %arg5[%c3_30, %c0_31, %c0_32] : memref<10x64x1xf32, #tpu.memory_space<vmem>>, vector<1x64x1xf32>
    %45 = vector.shape_cast %44 : vector<1x64x1xf32> to vector<64x1xf32>
    %46 = vector.broadcast %45 : vector<64x1xf32> to vector<64x256xf32>
    %47 = arith.addf %43, %46 : vector<64x256xf32>
    %cst_33 = arith.constant 0.000000e+00 : f32
    %48 = vector.broadcast %cst_33 : f32 to vector<64x256xf32>
    %49 = arith.maximumf %47, %48 : vector<64x256xf32>
    %c4 = arith.constant 4 : index
    %c0_34 = arith.constant 0 : index
    %c0_35 = arith.constant 0 : index
    %50 = vector.load %arg4[%c4, %c0_34, %c0_35] : memref<10x64x64xbf16, #tpu.memory_space<vmem>>, vector<1x64x64xbf16>
    %51 = vector.shape_cast %50 : vector<1x64x64xbf16> to vector<64x64xbf16>
    %52 = arith.truncf %49 : vector<64x256xf32> to vector<64x256xbf16>
    %cst_36 = arith.constant dense<0.000000e+00> : vector<64x256xf32>
    %53 = tpu.matmul %51, %52, %cst_36 {dimension_numbers = #tpu.dot_dimension_numbers<[1], [0], [0], [1], [0, 0, 1, 1], [], []>} : vector<64x64xbf16>, vector<64x256xbf16>, vector<64x256xf32> -> vector<64x256xf32>
    %c4_37 = arith.constant 4 : index
    %c0_38 = arith.constant 0 : index
    %c0_39 = arith.constant 0 : index
    %54 = vector.load %arg5[%c4_37, %c0_38, %c0_39] : memref<10x64x1xf32, #tpu.memory_space<vmem>>, vector<1x64x1xf32>
    %55 = vector.shape_cast %54 : vector<1x64x1xf32> to vector<64x1xf32>
    %56 = vector.broadcast %55 : vector<64x1xf32> to vector<64x256xf32>
    %57 = arith.addf %53, %56 : vector<64x256xf32>
    %cst_40 = arith.constant 0.000000e+00 : f32
    %58 = vector.broadcast %cst_40 : f32 to vector<64x256xf32>
    %59 = arith.maximumf %57, %58 : vector<64x256xf32>
    %c5 = arith.constant 5 : index
    %c0_41 = arith.constant 0 : index
    %c0_42 = arith.constant 0 : index
    %60 = vector.load %arg4[%c5, %c0_41, %c0_42] : memref<10x64x64xbf16, #tpu.memory_space<vmem>>, vector<1x64x64xbf16>
    %61 = vector.shape_cast %60 : vector<1x64x64xbf16> to vector<64x64xbf16>
    %62 = arith.truncf %59 : vector<64x256xf32> to vector<64x256xbf16>
    %cst_43 = arith.constant dense<0.000000e+00> : vector<64x256xf32>
    %63 = tpu.matmul %61, %62, %cst_43 {dimension_numbers = #tpu.dot_dimension_numbers<[1], [0], [0], [1], [0, 0, 1, 1], [], []>} : vector<64x64xbf16>, vector<64x256xbf16>, vector<64x256xf32> -> vector<64x256xf32>
    %c5_44 = arith.constant 5 : index
    %c0_45 = arith.constant 0 : index
    %c0_46 = arith.constant 0 : index
    %64 = vector.load %arg5[%c5_44, %c0_45, %c0_46] : memref<10x64x1xf32, #tpu.memory_space<vmem>>, vector<1x64x1xf32>
    %65 = vector.shape_cast %64 : vector<1x64x1xf32> to vector<64x1xf32>
    %66 = vector.broadcast %65 : vector<64x1xf32> to vector<64x256xf32>
    %67 = arith.addf %63, %66 : vector<64x256xf32>
    %cst_47 = arith.constant 0.000000e+00 : f32
    %68 = vector.broadcast %cst_47 : f32 to vector<64x256xf32>
    %69 = arith.maximumf %67, %68 : vector<64x256xf32>
    %c6 = arith.constant 6 : index
    %c0_48 = arith.constant 0 : index
    %c0_49 = arith.constant 0 : index
    %70 = vector.load %arg4[%c6, %c0_48, %c0_49] : memref<10x64x64xbf16, #tpu.memory_space<vmem>>, vector<1x64x64xbf16>
    %71 = vector.shape_cast %70 : vector<1x64x64xbf16> to vector<64x64xbf16>
    %72 = arith.truncf %69 : vector<64x256xf32> to vector<64x256xbf16>
    %cst_50 = arith.constant dense<0.000000e+00> : vector<64x256xf32>
    %73 = tpu.matmul %71, %72, %cst_50 {dimension_numbers = #tpu.dot_dimension_numbers<[1], [0], [0], [1], [0, 0, 1, 1], [], []>} : vector<64x64xbf16>, vector<64x256xbf16>, vector<64x256xf32> -> vector<64x256xf32>
    %c6_51 = arith.constant 6 : index
    %c0_52 = arith.constant 0 : index
    %c0_53 = arith.constant 0 : index
    %74 = vector.load %arg5[%c6_51, %c0_52, %c0_53] : memref<10x64x1xf32, #tpu.memory_space<vmem>>, vector<1x64x1xf32>
    %75 = vector.shape_cast %74 : vector<1x64x1xf32> to vector<64x1xf32>
    %76 = vector.broadcast %75 : vector<64x1xf32> to vector<64x256xf32>
    %77 = arith.addf %73, %76 : vector<64x256xf32>
    %cst_54 = arith.constant 0.000000e+00 : f32
    %78 = vector.broadcast %cst_54 : f32 to vector<64x256xf32>
    %79 = arith.maximumf %77, %78 : vector<64x256xf32>
    %c7 = arith.constant 7 : index
    %c0_55 = arith.constant 0 : index
    %c0_56 = arith.constant 0 : index
    %80 = vector.load %arg4[%c7, %c0_55, %c0_56] : memref<10x64x64xbf16, #tpu.memory_space<vmem>>, vector<1x64x64xbf16>
    %81 = vector.shape_cast %80 : vector<1x64x64xbf16> to vector<64x64xbf16>
    %82 = arith.truncf %79 : vector<64x256xf32> to vector<64x256xbf16>
    %cst_57 = arith.constant dense<0.000000e+00> : vector<64x256xf32>
    %83 = tpu.matmul %81, %82, %cst_57 {dimension_numbers = #tpu.dot_dimension_numbers<[1], [0], [0], [1], [0, 0, 1, 1], [], []>} : vector<64x64xbf16>, vector<64x256xbf16>, vector<64x256xf32> -> vector<64x256xf32>
    %c7_58 = arith.constant 7 : index
    %c0_59 = arith.constant 0 : index
    %c0_60 = arith.constant 0 : index
    %84 = vector.load %arg5[%c7_58, %c0_59, %c0_60] : memref<10x64x1xf32, #tpu.memory_space<vmem>>, vector<1x64x1xf32>
    %85 = vector.shape_cast %84 : vector<1x64x1xf32> to vector<64x1xf32>
    %86 = vector.broadcast %85 : vector<64x1xf32> to vector<64x256xf32>
    %87 = arith.addf %83, %86 : vector<64x256xf32>
    %cst_61 = arith.constant 0.000000e+00 : f32
    %88 = vector.broadcast %cst_61 : f32 to vector<64x256xf32>
    %89 = arith.maximumf %87, %88 : vector<64x256xf32>
    %c8 = arith.constant 8 : index
    %c0_62 = arith.constant 0 : index
    %c0_63 = arith.constant 0 : index
    %90 = vector.load %arg4[%c8, %c0_62, %c0_63] : memref<10x64x64xbf16, #tpu.memory_space<vmem>>, vector<1x64x64xbf16>
    %91 = vector.shape_cast %90 : vector<1x64x64xbf16> to vector<64x64xbf16>
    %92 = arith.truncf %89 : vector<64x256xf32> to vector<64x256xbf16>
    %cst_64 = arith.constant dense<0.000000e+00> : vector<64x256xf32>
    %93 = tpu.matmul %91, %92, %cst_64 {dimension_numbers = #tpu.dot_dimension_numbers<[1], [0], [0], [1], [0, 0, 1, 1], [], []>} : vector<64x64xbf16>, vector<64x256xbf16>, vector<64x256xf32> -> vector<64x256xf32>
    %c8_65 = arith.constant 8 : index
    %c0_66 = arith.constant 0 : index
    %c0_67 = arith.constant 0 : index
    %94 = vector.load %arg5[%c8_65, %c0_66, %c0_67] : memref<10x64x1xf32, #tpu.memory_space<vmem>>, vector<1x64x1xf32>
    %95 = vector.shape_cast %94 : vector<1x64x1xf32> to vector<64x1xf32>
    %96 = vector.broadcast %95 : vector<64x1xf32> to vector<64x256xf32>
    %97 = arith.addf %93, %96 : vector<64x256xf32>
    %cst_68 = arith.constant 0.000000e+00 : f32
    %98 = vector.broadcast %cst_68 : f32 to vector<64x256xf32>
    %99 = arith.maximumf %97, %98 : vector<64x256xf32>
    %c9 = arith.constant 9 : index
    %c0_69 = arith.constant 0 : index
    %c0_70 = arith.constant 0 : index
    %100 = vector.load %arg4[%c9, %c0_69, %c0_70] : memref<10x64x64xbf16, #tpu.memory_space<vmem>>, vector<1x64x64xbf16>
    %101 = vector.shape_cast %100 : vector<1x64x64xbf16> to vector<64x64xbf16>
    %102 = arith.truncf %99 : vector<64x256xf32> to vector<64x256xbf16>
    %cst_71 = arith.constant dense<0.000000e+00> : vector<64x256xf32>
    %103 = tpu.matmul %101, %102, %cst_71 {dimension_numbers = #tpu.dot_dimension_numbers<[1], [0], [0], [1], [0, 0, 1, 1], [], []>} : vector<64x64xbf16>, vector<64x256xbf16>, vector<64x256xf32> -> vector<64x256xf32>
    %c9_72 = arith.constant 9 : index
    %c0_73 = arith.constant 0 : index
    %c0_74 = arith.constant 0 : index
    %104 = vector.load %arg5[%c9_72, %c0_73, %c0_74] : memref<10x64x1xf32, #tpu.memory_space<vmem>>, vector<1x64x1xf32>
    %105 = vector.shape_cast %104 : vector<1x64x1xf32> to vector<64x1xf32>
    %106 = vector.broadcast %105 : vector<64x1xf32> to vector<64x256xf32>
    %107 = arith.addf %103, %106 : vector<64x256xf32>
    %cst_75 = arith.constant 0.000000e+00 : f32
    %108 = vector.broadcast %cst_75 : f32 to vector<64x256xf32>
    %109 = arith.maximumf %107, %108 : vector<64x256xf32>
    %c0_76 = arith.constant 0 : index
    %c0_77 = arith.constant 0 : index
    %110 = vector.load %arg6[%c0_76, %c0_77] : memref<1x64xbf16, #tpu.memory_space<vmem>>, vector<1x64xbf16>
    %111 = arith.truncf %109 : vector<64x256xf32> to vector<64x256xbf16>
    %cst_78 = arith.constant dense<0.000000e+00> : vector<1x256xf32>
    %112 = tpu.matmul %110, %111, %cst_78 {dimension_numbers = #tpu.dot_dimension_numbers<[1], [0], [0], [1], [0, 0, 1, 1], [], []>} : vector<1x64xbf16>, vector<64x256xbf16>, vector<1x256xf32> -> vector<1x256xf32>
    %c0_79 = arith.constant 0 : index
    %c0_80 = arith.constant 0 : index
    %113 = memref.load %arg7[%c0_79, %c0_80] : memref<1x1xf32, #tpu.memory_space<smem>>
    %114 = vector.broadcast %113 : f32 to vector<1x256xf32>
    %115 = arith.addf %112, %114 : vector<1x256xf32>
    %c0_81 = arith.constant 0 : index
    %c0_82 = arith.constant 0 : index
    %116 = vector.load %arg8[%c0_81, %c0_82] : memref<1x256xf32, #tpu.memory_space<vmem>>, vector<1x256xf32>
    tpu.vector_store %arg8[%c0_81, %c0_82], %115 {strides = array<i32>} : memref<1x256xf32, #tpu.memory_space<vmem>>, vector<1x256xf32>,
    return
  }
  func.func @transform_0(%arg0: i32) -> (i32, i32) {
    %c0_i32 = arith.constant 0 : i32
    %c0_i32_0 = arith.constant 0 : i32
    return %c0_i32, %arg0 : i32, i32
  }
  func.func @transform_1(%arg0: i32) -> (i32, i32) {
    %c0_i32 = arith.constant 0 : i32
    %c0_i32_0 = arith.constant 0 : i32
    %c0_i32_1 = arith.constant 0 : i32
    return %c0_i32, %c0_i32_0 : i32, i32
  }
  func.func @transform_2(%arg0: i32) -> (i32, i32) {
    %c0_i32 = arith.constant 0 : i32
    %c0_i32_0 = arith.constant 0 : i32
    %c0_i32_1 = arith.constant 0 : i32
    return %c0_i32, %c0_i32_0 : i32, i32
  }
  func.func @transform_3(%arg0: i32) -> (i32, i32, i32) {
    %c0_i32 = arith.constant 0 : i32
    %c0_i32_0 = arith.constant 0 : i32
    %c0_i32_1 = arith.constant 0 : i32
    %c0_i32_2 = arith.constant 0 : i32
    return %c0_i32, %c0_i32_0, %c0_i32_1 : i32, i32, i32
  }
  func.func @transform_4(%arg0: i32) -> (i32, i32, i32) {
    %c0_i32 = arith.constant 0 : i32
    %c0_i32_0 = arith.constant 0 : i32
    %c0_i32_1 = arith.constant 0 : i32
    %c0_i32_2 = arith.constant 0 : i32
    return %c0_i32, %c0_i32_0, %c0_i32_1 : i32, i32, i32
  }
  func.func @transform_5(%arg0: i32) -> (i32, i32) {
    %c0_i32 = arith.constant 0 : i32
    %c0_i32_0 = arith.constant 0 : i32
    %c0_i32_1 = arith.constant 0 : i32
    return %c0_i32, %c0_i32_0 : i32, i32
  }
  func.func @transform_6(%arg0: i32) -> (i32, i32) {
    %c0_i32 = arith.constant 0 : i32
    %c0_i32_0 = arith.constant 0 : i32
    %c0_i32_1 = arith.constant 0 : i32
    return %c0_i32, %c0_i32_0 : i32, i32
  }
  func.func @transform_7(%arg0: i32) -> (i32, i32) {
    %c0_i32 = arith.constant 0 : i32
    %c0_i32_0 = arith.constant 0 : i32
    return %c0_i32, %arg0 : i32, i32
  }
}

</mosaic_0001>

<llo_original>
// kernel: tpu_custom_call.1
$region0: #{tpu_custom_call.1}
  #allocation0 [shape = 'u32[]', space=smem, size = 0x4, offset = 0x4, fixed_abs, tag = 'smem constant byte address 0x4 - core index']
  #allocation1 [shape = 'u32[144,128]{1,0:T(1,128)}', space=vmem, size = 0x12000, scoped, tag = 'internal scratch']
  #allocation2 [shape = 'f32[1,1]{1,0:T(1,128)S(6)}', space=smem, size = 0x200, scoped, tag = 'scoped memory for tpu_custom_call.1']
  %s0 = inlined_call_operand.vmem [shape: f32[1,512], index: 0, kind: input, shape index: {}]
  %s1 = inlined_call_operand.vmem [shape: f32[64,1], index: 1, kind: input, shape index: {}]
  %s2 = inlined_call_operand.vmem [shape: f32[64,1], index: 2, kind: input, shape index: {}]
  %s3 = inlined_call_operand.vmem [shape: bf16[10,64,64], index: 3, kind: input, shape index: {}]
  %s4 = inlined_call_operand.vmem [shape: f32[10,64,1], index: 4, kind: input, shape index: {}]
  %s5 = inlined_call_operand.vmem [shape: bf16[1,64], index: 5, kind: input, shape index: {}]
  %s6 = inlined_call_operand.<no memory space> [shape: f32[1,1], index: 6, kind: input, shape index: {}]
  %s7 = inlined_call_operand.hbm [shape: f32[1,512], index: 7, kind: output, shape index: {}]
  %s8 = sld [smem:[#allocation0]]
  $region61: #{tpu_custom_call.1} parent=0
    _
  %s10 = ssub.s32 1, %s8
  %s11 = scalar_select 0, %s10, %s8
  %12 = sst [smem:[#allocation2]] %s6
  $region1: #{tpu_custom_call.1} parent=0
    #allocation3 [shape = 'u8[2048]{0}', space=vmem, size = 0x800, scoped, tag = 'output window, operand 0']
    #allocation4 [shape = 's32[2]{0}', space=sflag, size = 0x8, scoped, tag = 'scoped memory for tpu_custom_call.1']
    %13 = vsyncpa [#allocation4], 0
    %s14 = scalar_lea.sflag [#allocation4], 1
    %15 = vsyncpa %s14, 0
    loop: start=0, step=1, limit=4
    $region2: #{tpu_custom_call.1} parent=1 // loop_pre_header
      _
    $region3: #{tpu_custom_call.1} parent=1 // loop_header
      %s17 = sphi 0, %s21
      %p18 = scmp.ge.s32.totalorder %s17, 4
      %s27 = sphi 0, %s29
      %s30 = sphi 0, %s27
      %s31 = sphi 0, %s30
      %s47 = sphi 0, %s31
      %s51 = sphi 0, %s51
      %s53 = sphi 0, %s51
      %s54 = sphi 0, %s53
      %s68 = sphi 0, %s54
      %s72 = sphi 0, %s72
      %s74 = sphi 0, %s72
      %s75 = sphi 0, %s74
      %s89 = sphi 0, %s75
      %s93 = sphi 0, %s93
      %s95 = sphi 0, %s93
      %s96 = sphi 0, %s95
      %s110 = sphi 0, %s96
      %s114 = sphi 0, %s114
      %s116 = sphi 0, %s114
      %s117 = sphi 0, %s116
      %s131 = sphi 0, %s117
      %s135 = sphi 0, %s135
      %s137 = sphi 0, %s135
      %s138 = sphi 0, %s137
      %s152 = sphi 0, %s138
      %s156 = sphi 0, %s156
      %s158 = sphi 0, %s156
      %s159 = sphi 0, %s158
      %s173 = sphi 0, %s159
      %s179 = sphi 0, %s181
      %s182 = sphi 0, %s179
      %s183 = sphi 0, %s182
      %s199 = sphi 0, %s183
    $region4: #{tpu_custom_call.1} parent=1 // loop_header_branch
      %20 = sbr.rel (%p18) target = $region8
    $region5: #{tpu_custom_call.1} parent=1 // loop_body
      %s22 = ssub.s32 %s17, 1
      %s23 = ssub.s32 %s17, 2
      %s24 = sadd.s32 %s17, 1
      %s25 = ssub.s32 %s17, %s24
      %p26 = scmp.eq.s32.totalorder %s25, 0
      %s28 = sadd.s32 %s27, 1
      %s29 = scalar_select %p26, %s27, %s28
      %p32 = pneg %p26
      %p33 = scmp.eq.s32.totalorder %s17, 1
      %p34 = por %p32, %p33
      %p35 = scmp.ne.s32.totalorder %s27, %s30
      %p36 = scmp.eq.s32.totalorder %s17, 0
      %p37 = por %p35, %p36
      %p38 = scmp.ne.s32.totalorder %s27, %s30
      %p39 = scmp.eq.s32.totalorder %s22, 1
      %p40 = por %p38, %p39
      %p41 = scmp.ne.s32.totalorder %s30, %s31
      %p42 = scmp.eq.s32.totalorder %s22, 0
      %p43 = por %p41, %p42
      %p44 = scmp.ne.s32.totalorder %s30, %s31
      %p45 = scmp.eq.s32.totalorder %s23, 1
      %p46 = por %p44, %p45
      %p48 = scmp.ne.s32.totalorder %s31, %s47
      %p49 = scmp.eq.s32.totalorder %s23, 0
      %p50 = por %p48, %p49
      %s52 = sadd.s32 %s51, 1
      %p55 = scmp.eq.s32.totalorder %s17, 1
      %p56 = scmp.ne.s32.totalorder %s51, %s53
      %p57 = scmp.eq.s32.totalorder %s17, 0
      %p58 = por %p56, %p57
      %p59 = scmp.ne.s32.totalorder %s51, %s53
      %p60 = scmp.eq.s32.totalorder %s22, 1
      %p61 = por %p59, %p60
      %p62 = scmp.ne.s32.totalorder %s53, %s54
      %p63 = scmp.eq.s32.totalorder %s22, 0
      %p64 = por %p62, %p63
      %p65 = scmp.ne.s32.totalorder %s53, %s54
      %p66 = scmp.eq.s32.totalorder %s23, 1
      %p67 = por %p65, %p66
      %p69 = scmp.ne.s32.totalorder %s54, %s68
      %p70 = scmp.eq.s32.totalorder %s23, 0
      %p71 = por %p69, %p70
      %s73 = sadd.s32 %s72, 1
      %p76 = scmp.eq.s32.totalorder %s17, 1
      %p77 = scmp.ne.s32.totalorder %s72, %s74
      %p78 = scmp.eq.s32.totalorder %s17, 0
      %p79 = por %p77, %p78
      %p80 = scmp.ne.s32.totalorder %s72, %s74
      %p81 = scmp.eq.s32.totalorder %s22, 1
      %p82 = por %p80, %p81
      %p83 = scmp.ne.s32.totalorder %s74, %s75
      %p84 = scmp.eq.s32.totalorder %s22, 0
      %p85 = por %p83, %p84
      %p86 = scmp.ne.s32.totalorder %s74, %s75
      %p87 = scmp.eq.s32.totalorder %s23, 1
      %p88 = por %p86, %p87
      %p90 = scmp.ne.s32.totalorder %s75, %s89
      %p91 = scmp.eq.s32.totalorder %s23, 0
      %p92 = por %p90, %p91
      %s94 = sadd.s32 %s93, 1
      %p97 = scmp.eq.s32.totalorder %s17, 1
      %p98 = scmp.ne.s32.totalorder %s93, %s95
      %p99 = scmp.eq.s32.totalorder %s17, 0
      %p100 = por %p98, %p99
      %p101 = scmp.ne.s32.totalorder %s93, %s95
      %p102 = scmp.eq.s32.totalorder %s22, 1
      %p103 = por %p101, %p102
      %p104 = scmp.ne.s32.totalorder %s95, %s96
      %p105 = scmp.eq.s32.totalorder %s22, 0
      %p106 = por %p104, %p105
      %p107 = scmp.ne.s32.totalorder %s95, %s96
      %p108 = scmp.eq.s32.totalorder %s23, 1
      %p109 = por %p107, %p108
      %p111 = scmp.ne.s32.totalorder %s96, %s110
      %p112 = scmp.eq.s32.totalorder %s23, 0
      %p113 = por %p111, %p112
      %s115 = sadd.s32 %s114, 1
      %p118 = scmp.eq.s32.totalorder %s17, 1
      %p119 = scmp.ne.s32.totalorder %s114, %s116
      %p120 = scmp.eq.s32.totalorder %s17, 0
      %p121 = por %p119, %p120
      %p122 = scmp.ne.s32.totalorder %s114, %s116
      %p123 = scmp.eq.s32.totalorder %s22, 1
      %p124 = por %p122, %p123
      %p125 = scmp.ne.s32.totalorder %s116, %s117
      %p126 = scmp.eq.s32.totalorder %s22, 0
      %p127 = por %p125, %p126
      %p128 = scmp.ne.s32.totalorder %s116, %s117
      %p129 = scmp.eq.s32.totalorder %s23, 1
      %p130 = por %p128, %p129
      %p132 = scmp.ne.s32.totalorder %s117, %s131
      %p133 = scmp.eq.s32.totalorder %s23, 0
      %p134 = por %p132, %p133
      %s136 = sadd.s32 %s135, 1
      %p139 = scmp.eq.s32.totalorder %s17, 1
      %p140 = scmp.ne.s32.totalorder %s135, %s137
      %p141 = scmp.eq.s32.totalorder %s17, 0
      %p142 = por %p140, %p141
      %p143 = scmp.ne.s32.totalorder %s135, %s137
      %p144 = scmp.eq.s32.totalorder %s22, 1
      %p145 = por %p143, %p144
      %p146 = scmp.ne.s32.totalorder %s137, %s138
      %p147 = scmp.eq.s32.totalorder %s22, 0
      %p148 = por %p146, %p147
      %p149 = scmp.ne.s32.totalorder %s137, %s138
      %p150 = scmp.eq.s32.totalorder %s23, 1
      %p151 = por %p149, %p150
      %p153 = scmp.ne.s32.totalorder %s138, %s152
      %p154 = scmp.eq.s32.totalorder %s23, 0
      %p155 = por %p153, %p154
      %s157 = sadd.s32 %s156, 1
      %p160 = scmp.eq.s32.totalorder %s17, 1
      %p161 = scmp.ne.s32.totalorder %s156, %s158
      %p162 = scmp.eq.s32.totalorder %s17, 0
      %p163 = por %p161, %p162
      %p164 = scmp.ne.s32.totalorder %s156, %s158
      %p165 = scmp.eq.s32.totalorder %s22, 1
      %p166 = por %p164, %p165
      %p167 = scmp.ne.s32.totalorder %s158, %s159
      %p168 = scmp.eq.s32.totalorder %s22, 0
      %p169 = por %p167, %p168
      %p170 = scmp.ne.s32.totalorder %s158, %s159
      %p171 = scmp.eq.s32.totalorder %s23, 1
      %p172 = por %p170, %p171
      %p174 = scmp.ne.s32.totalorder %s159, %s173
      %p175 = scmp.eq.s32.totalorder %s23, 0
      %p176 = por %p174, %p175
      %s177 = ssub.s32 %s17, %s24
      %p178 = scmp.eq.s32.totalorder %s177, 0
      %s180 = sadd.s32 %s179, 1
      %s181 = scalar_select %p178, %s179, %s180
      %p184 = pneg %p178
      %p185 = scmp.eq.s32.totalorder %s17, 1
      %p186 = por %p184, %p185
      %p187 = scmp.ne.s32.totalorder %s179, %s182
      %p188 = scmp.eq.s32.totalorder %s17, 0
      %p189 = por %p187, %p188
      %p190 = scmp.ne.s32.totalorder %s179, %s182
      %p191 = scmp.eq.s32.totalorder %s22, 1
      %p192 = por %p190, %p191
      %p193 = scmp.ne.s32.totalorder %s182, %s183
      %p194 = scmp.eq.s32.totalorder %s22, 0
      %p195 = por %p193, %p194
      %p196 = scmp.ne.s32.totalorder %s182, %s183
      %p197 = scmp.eq.s32.totalorder %s23, 1
      %p198 = por %p196, %p197
      %p200 = scmp.ne.s32.totalorder %s183, %s199
      %p201 = scmp.eq.s32.totalorder %s23, 0
      %p202 = por %p200, %p201
      %p203 = scmp.le.s32.totalorder 1, %s17
      %p204 = scmp.lt.s32.totalorder %s17, 3
      %p205 = pnand %p203, %p204
      %p206 = pneg %p205
      // Predicated region
      $region9: #{tpu_custom_call.1} parent=5 // pred_check
        _
      $region10: #{tpu_custom_call.1} parent=5 // pred_check_branch
        %208 = sbr.rel (%p205) target = $region12
      $region11: #{tpu_custom_call.1} parent=5 // pred_region
        %s209 = ssub.s32 %s17, 1
        // Predicated region
        $region13: #{tpu_custom_call.1} parent=11 // pred_check
          %p210 = pneg %p64
        $region14: #{tpu_custom_call.1} parent=11 // pred_check_branch
          %212 = sbr.rel (%p210) target = $region16
        $region15: #{tpu_custom_call.1} parent=11 // pred_region
          _
        $region16: #{tpu_custom_call.1} parent=11 // pred_fallthru
          _
        // Predicated region
        $region17: #{tpu_custom_call.1} parent=11 // pred_check
          %p213 = pneg %p85
        $region18: #{tpu_custom_call.1} parent=11 // pred_check_branch
          %215 = sbr.rel (%p213) target = $region20
        $region19: #{tpu_custom_call.1} parent=11 // pred_region
          _
        $region20: #{tpu_custom_call.1} parent=11 // pred_fallthru
          _
        // Predicated region
        $region21: #{tpu_custom_call.1} parent=11 // pred_check
          %p216 = pneg %p106
        $region22: #{tpu_custom_call.1} parent=11 // pred_check_branch
          %218 = sbr.rel (%p216) target = $region24
        $region23: #{tpu_custom_call.1} parent=11 // pred_region
          _
        $region24: #{tpu_custom_call.1} parent=11 // pred_fallthru
          _
        // Predicated region
        $region25: #{tpu_custom_call.1} parent=11 // pred_check
          %p219 = pneg %p127
        $region26: #{tpu_custom_call.1} parent=11 // pred_check_branch
          %221 = sbr.rel (%p219) target = $region28
        $region27: #{tpu_custom_call.1} parent=11 // pred_region
          _
        $region28: #{tpu_custom_call.1} parent=11 // pred_fallthru
          _
        // Predicated region
        $region29: #{tpu_custom_call.1} parent=11 // pred_check
          %p222 = pneg %p148
        $region30: #{tpu_custom_call.1} parent=11 // pred_check_branch
          %224 = sbr.rel (%p222) target = $region32
        $region31: #{tpu_custom_call.1} parent=11 // pred_region
          _
        $region32: #{tpu_custom_call.1} parent=11 // pred_fallthru
          _
        // Predicated region
        $region33: #{tpu_custom_call.1} parent=11 // pred_check
          %p225 = pneg %p169
        $region34: #{tpu_custom_call.1} parent=11 // pred_check_branch
          %227 = sbr.rel (%p225) target = $region36
        $region35: #{tpu_custom_call.1} parent=11 // pred_region
          _
        $region36: #{tpu_custom_call.1} parent=11 // pred_fallthru
          _
      $region12: #{tpu_custom_call.1} parent=5 // pred_fallthru
        _
      %p228 = scmp.lt.s32.totalorder %s17, 2
      // Predicated region
      $region37: #{tpu_custom_call.1} parent=5 // pred_check
        %p229 = pneg %p228
      $region38: #{tpu_custom_call.1} parent=5 // pred_check_branch
        %231 = sbr.rel (%p229) target = $region40
      $region39: #{tpu_custom_call.1} parent=5 // pred_region
        // Predicated region
        $region41: #{tpu_custom_call.1} parent=39 // pred_check
          %p232 = pneg %p37
        $region42: #{tpu_custom_call.1} parent=39 // pred_check_branch
          %234 = sbr.rel (%p232) target = $region44
        $region43: #{tpu_custom_call.1} parent=39 // pred_region
          %s235 = smul.u32 2, %s17
          %p236 = scmp.lt.s32.totalorder %s235, 3
          %s237 = scalar_select %p236, %s235, 3
          %s238 = scalar_lea.vmem %s0, %s237
          %s239 = smul.u32 2, %s17
        $region44: #{tpu_custom_call.1} parent=39 // pred_fallthru
          _
      $region40: #{tpu_custom_call.1} parent=5 // pred_fallthru
        _
      %p240 = scmp.le.s32.totalorder 1, %s17
      %p241 = scmp.lt.s32.totalorder %s17, 3
      %p242 = pnand %p240, %p241
      %p243 = pneg %p242
      // Predicated region
      $region45: #{tpu_custom_call.1} parent=5 // pred_check
        _
      $region46: #{tpu_custom_call.1} parent=5 // pred_check_branch
        %245 = sbr.rel (%p242) target = $region48
      $region47: #{tpu_custom_call.1} parent=5 // pred_region
        %s246 = ssub.s32 %s17, 1
        %s247 = smul.u32 2, %s22
        %p248 = scmp.lt.s32.totalorder %s247, 3
        %s249 = scalar_select %p248, %s247, 3
        %s250 = scalar_lea.vmem %s0, %s249
        %p251 = pneg %p43
        %p252 = pneg %p40
        %p253 = pneg %p64
        %p254 = pneg %p61
        %p255 = pneg %p85
        %p256 = pneg %p82
        %p257 = pneg %p106
        %p258 = pneg %p103
        %p259 = pneg %p127
        %p260 = pneg %p124
        %p261 = pneg %p148
        %p262 = pneg %p145
        %p263 = pneg %p169
        %p264 = pneg %p166
        %p265 = pneg %p195
        %p266 = pneg %p192
        %s267 = sand.u32 %s182, 1
        %s268 = scalar_lea.sflag [#allocation4], %s267
        %s269 = sand.u32 %s182, 1
        %s270 = smul.addr %s269, 2
        %s271 = scalar_lea.vmem [#allocation3], %s270
        %s272 = smul.u32 2, %s22
        %p273 = scmp.lt.s32.totalorder %s272, 3
        %s274 = scalar_select %p273, %s272, 3
        %s275 = scalar_lea.vmem %s0, %s274
        %s276 = smul.u32 2, %s22
        %s277 = smul.u32 2, %s22
        %v279 = vld [vmem:[%s275] sm:$0x3]
        %v280 = vld [vmem:[%s1] sm:$0xff]
        %v281 = vld [vmem:[%s1 + $0x8] sm:$0xff]
        %v282 = vld [vmem:[%s1 + $0x10] sm:$0xff]
        %v283 = vld [vmem:[%s1 + $0x18] sm:$0xff]
        %v284 = vld [vmem:[%s1 + $0x20] sm:$0xff]
        %v285 = vld [vmem:[%s1 + $0x28] sm:$0xff]
        %v286 = vld [vmem:[%s1 + $0x30] sm:$0xff]
        %v287 = vld [vmem:[%s1 + $0x38] sm:$0xff]
        %289 = vset.pattern.permute.xlu0 0
        %290 = vperm.xlu0 %289, %v280
        %v291 = vpop.permute.xlu0 %290
        %294 = vset.pattern.permute.xlu0 0
        %295 = vperm.xlu0 %294, %v281
        %v296 = vpop.permute.xlu0 %295
        %299 = vset.pattern.permute.xlu0 0
        %300 = vperm.xlu0 %299, %v282
        %v301 = vpop.permute.xlu0 %300
        %304 = vset.pattern.permute.xlu0 0
        %305 = vperm.xlu0 %304, %v283
        %v306 = vpop.permute.xlu0 %305
        %309 = vset.pattern.permute.xlu0 0
        %310 = vperm.xlu0 %309, %v284
        %v311 = vpop.permute.xlu0 %310
        %314 = vset.pattern.permute.xlu0 0
        %315 = vperm.xlu0 %314, %v285
        %v316 = vpop.permute.xlu0 %315
        %319 = vset.pattern.permute.xlu0 0
        %320 = vperm.xlu0 %319, %v286
        %v321 = vpop.permute.xlu0 %320
        %324 = vset.pattern.permute.xlu0 0
        %325 = vperm.xlu0 %324, %v287
        %v326 = vpop.permute.xlu0 %325
        %v329 = vlaneseq
        %v330 = vshrl.u32 %v329, 7
        %v331 = vsub.s32 0, %v330
        %v332 = vrot.slane %v279, %v331
        %v333 = vlaneseq
        %v334 = vshrl.u32 %v333, 7
        %v335 = vsub.s32 1, %v334
        %v336 = vrot.slane %v279, %v335
        %v339 = vmul.f32 %v291, %v332
        %v340 = vmul.f32 %v291, %v336
        %v341 = vmul.f32 %v296, %v332
        %v342 = vmul.f32 %v296, %v336
        %v343 = vmul.f32 %v301, %v332
        %v344 = vmul.f32 %v301, %v336
        %v345 = vmul.f32 %v306, %v332
        %v346 = vmul.f32 %v306, %v336
        %v347 = vmul.f32 %v311, %v332
        %v348 = vmul.f32 %v311, %v336
        %v349 = vmul.f32 %v316, %v332
        %v350 = vmul.f32 %v316, %v336
        %v351 = vmul.f32 %v321, %v332
        %v352 = vmul.f32 %v321, %v336
        %v353 = vmul.f32 %v326, %v332
        %v354 = vmul.f32 %v326, %v336
        %v355 = vld [vmem:[%s2] sm:$0xff]
        %v356 = vld [vmem:[%s2 + $0x8] sm:$0xff]
        %v357 = vld [vmem:[%s2 + $0x10] sm:$0xff]
        %v358 = vld [vmem:[%s2 + $0x18] sm:$0xff]
        %v359 = vld [vmem:[%s2 + $0x20] sm:$0xff]
        %v360 = vld [vmem:[%s2 + $0x28] sm:$0xff]
        %v361 = vld [vmem:[%s2 + $0x30] sm:$0xff]
        %v362 = vld [vmem:[%s2 + $0x38] sm:$0xff]
        %364 = vset.pattern.permute.xlu0 0
        %365 = vperm.xlu0 %364, %v355
        %v366 = vpop.permute.xlu0 %365
        %369 = vset.pattern.permute.xlu0 0
        %370 = vperm.xlu0 %369, %v356
        %v371 = vpop.permute.xlu0 %370
        %374 = vset.pattern.permute.xlu0 0
        %375 = vperm.xlu0 %374, %v357
        %v376 = vpop.permute.xlu0 %375
        %379 = vset.pattern.permute.xlu0 0
        %380 = vperm.xlu0 %379, %v358
        %v381 = vpop.permute.xlu0 %380
        %384 = vset.pattern.permute.xlu0 0
        %385 = vperm.xlu0 %384, %v359
        %v386 = vpop.permute.xlu0 %385
        %389 = vset.pattern.permute.xlu0 0
        %390 = vperm.xlu0 %389, %v360
        %v391 = vpop.permute.xlu0 %390
        %394 = vset.pattern.permute.xlu0 0
        %395 = vperm.xlu0 %394, %v361
        %v396 = vpop.permute.xlu0 %395
        %399 = vset.pattern.permute.xlu0 0
        %400 = vperm.xlu0 %399, %v362
        %v401 = vpop.permute.xlu0 %400
        %v403 = vadd.f32 %v339, %v366
        %v404 = vadd.f32 %v340, %v366
        %v405 = vadd.f32 %v341, %v371
        %v406 = vadd.f32 %v342, %v371
        %v407 = vadd.f32 %v343, %v376
        %v408 = vadd.f32 %v344, %v376
        %v409 = vadd.f32 %v345, %v381
        %v410 = vadd.f32 %v346, %v381
        %v411 = vadd.f32 %v347, %v386
        %v412 = vadd.f32 %v348, %v386
        %v413 = vadd.f32 %v349, %v391
        %v414 = vadd.f32 %v350, %v391
        %v415 = vadd.f32 %v351, %v396
        %v416 = vadd.f32 %v352, %v396
        %v417 = vadd.f32 %v353, %v401
        %v418 = vadd.f32 %v354, %v401
        %v419 = vmax.f32 %v403, 0.0
        %v420 = vmax.f32 %v404, 0.0
        %v421 = vmax.f32 %v405, 0.0
        %v422 = vmax.f32 %v406, 0.0
        %v423 = vmax.f32 %v407, 0.0
        %v424 = vmax.f32 %v408, 0.0
        %v425 = vmax.f32 %v409, 0.0
        %v426 = vmax.f32 %v410, 0.0
        %v427 = vmax.f32 %v411, 0.0
        %v428 = vmax.f32 %v412, 0.0
        %v429 = vmax.f32 %v413, 0.0
        %v430 = vmax.f32 %v414, 0.0
        %v431 = vmax.f32 %v415, 0.0
        %v432 = vmax.f32 %v416, 0.0
        %v433 = vmax.f32 %v417, 0.0
        %v434 = vmax.f32 %v418, 0.0
        %v435 = vld [vmem:[%s3] sm:$0xf]
        %v436 = vld [vmem:[%s3 + $0x4] sm:$0xf]
        %v437 = vld [vmem:[%s3 + $0x8] sm:$0xf]
        %v438 = vld [vmem:[%s3 + $0xc] sm:$0xf]
        %v439 = vld [vmem:[%s3 + $0x10] sm:$0xf]
        %v440 = vld [vmem:[%s3 + $0x14] sm:$0xf]
        %v441 = vld [vmem:[%s3 + $0x18] sm:$0xf]
        %v442 = vld [vmem:[%s3 + $0x1c] sm:$0xf]
        %v443 = vpack.c.bf16 %v421, %v419
        %v444 = vpack.c.bf16 %v422, %v420
        %v445 = vpack.c.bf16 %v425, %v423
        %v446 = vpack.c.bf16 %v426, %v424
        %v447 = vpack.c.bf16 %v429, %v427
        %v448 = vpack.c.bf16 %v430, %v428
        %v449 = vpack.c.bf16 %v433, %v431
        %v450 = vpack.c.bf16 %v434, %v432
        %v451 = vld [vmem:[%s4] sm:$0xff]
        %v452 = vld [vmem:[%s4 + $0x8] sm:$0xff]
        %v453 = vld [vmem:[%s4 + $0x10] sm:$0xff]
        %v454 = vld [vmem:[%s4 + $0x18] sm:$0xff]
        %v455 = vld [vmem:[%s4 + $0x20] sm:$0xff]
        %v456 = vld [vmem:[%s4 + $0x28] sm:$0xff]
        %v457 = vld [vmem:[%s4 + $0x30] sm:$0xff]
        %v458 = vld [vmem:[%s4 + $0x38] sm:$0xff]
        %460 = vset.pattern.permute.xlu0 0
        %461 = vperm.xlu0 %460, %v451
        %v462 = vpop.permute.xlu0 %461
        %465 = vset.pattern.permute.xlu0 0
        %466 = vperm.xlu0 %465, %v452
        %v467 = vpop.permute.xlu0 %466
        %470 = vset.pattern.permute.xlu0 0
        %471 = vperm.xlu0 %470, %v453
        %v472 = vpop.permute.xlu0 %471
        %475 = vset.pattern.permute.xlu0 0
        %476 = vperm.xlu0 %475, %v454
        %v477 = vpop.permute.xlu0 %476
        %480 = vset.pattern.permute.xlu0 0
        %481 = vperm.xlu0 %480, %v455
        %v482 = vpop.permute.xlu0 %481
        %485 = vset.pattern.permute.xlu0 0
        %486 = vperm.xlu0 %485, %v456
        %v487 = vpop.permute.xlu0 %486
        %490 = vset.pattern.permute.xlu0 0
        %491 = vperm.xlu0 %490, %v457
        %v492 = vpop.permute.xlu0 %491
        %495 = vset.pattern.permute.xlu0 0
        %496 = vperm.xlu0 %495, %v458
        %v497 = vpop.permute.xlu0 %496
        %v507 = vunpack.c.l.b16 %v435
        %v508 = vunpack.c.l.b16 %v436
        %v509 = vunpack.c.l.b16 %v437
        %v510 = vunpack.c.l.b16 %v438
        %v511 = vunpack.c.l.b16 %v439
        %v512 = vunpack.c.l.b16 %v440
        %v513 = vunpack.c.l.b16 %v441
        %v514 = vunpack.c.l.b16 %v442
        %v515 = vpack.c.b16 %v508, %v507
        %v516 = vpack.c.b16 %v510, %v509
        %v517 = vpack.c.b16 %v512, %v511
        %v518 = vpack.c.b16 %v514, %v513
        %vm519 = vcmask 523264
        %v521 = vsel %vm519, %v515, 0
        %v524 = vsel %vm519, %v516, 0
        %v527 = vsel %vm519, %v517, 0
        %v530 = vsel %vm519, %v518, 0
        %532 = vmatprep.subr.bf16.mxu0 0
        %533 = vmatpush1.bf16.msra.mxu0 0
        %534 = vmatprep.subr.bf16.mxu0 0
        %535 = vmatpush1.bf16.msra.mxu0 0
        %536 = vmatprep.subr.bf16.mxu0 0
        %537 = vmatpush1.bf16.msra.mxu0 0
        %538 = vmatprep.subr.bf16.mxu0 0
        %539 = vmatpush1.bf16.msra.mxu0 0
        %540 = vmatprep.subr.bf16.mxu0 %v450
        %541 = vmatpush1.bf16.msra.mxu0 %v449
        %542 = vmatprep.subr.bf16.mxu0 %v448
        %543 = vmatpush1.bf16.msra.mxu0 %v447
        %544 = vmatprep.subr.bf16.mxu0 %v446
        %545 = vmatpush1.bf16.msra.mxu0 %v445
        %546 = vmatprep.subr.bf16.mxu0 %v444
        %547 = vmatpush1.bf16.msra.mxu0 %v443
        %548 = vmatprep.subr.bf16.mxu0 0
        %549 = vmatpush2.bf16.msra.mxu0 0
        %550 = vmatprep.subr.bf16.mxu0 0
        %551 = vmatpush2.bf16.msra.mxu0 0
        %552 = vmatprep.subr.bf16.mxu0 0
        %553 = vmatpush2.bf16.msra.mxu0 0
        %554 = vmatprep.subr.bf16.mxu0 0
        %555 = vmatpush2.bf16.msra.mxu0 0
        %556 = vmatprep.subr.bf16.mxu0 0
        %557 = vmatpush2.bf16.msra.mxu0 0
        %558 = vmatprep.subr.bf16.mxu0 0
        %559 = vmatpush2.bf16.msra.mxu0 0
        %560 = vmatprep.subr.bf16.mxu0 0
        %561 = vmatpush2.bf16.msra.mxu0 0
        %562 = vmatprep.subr.bf16.mxu0 0
        %563 = vmatpush2.bf16.msra.mxu0 0
        %564 = vmatprep.mubr.bf16.mxu0 0
        %565 = vmatmul.mubr.bf16.gmra.mxu0 %v521
        %v566 = vpop.f32.mrf.mxu0
        %v567 = vadd.f32 %v462, %v566
        %v568 = vpop.f32.mrf.mxu0
        %v569 = vadd.f32 %v462, %v568
        %v570 = vpop.f32.mrf.mxu0
        %v571 = vadd.f32 %v467, %v570
        %v572 = vpop.f32.mrf.mxu0
        %v573 = vadd.f32 %v467, %v572
        %574 = vmatprep.mubr.bf16.mxu0 0
        %575 = vmatmul.mubr.bf16.gmra.mxu0 %v524
        %v576 = vpop.f32.mrf.mxu0
        %v577 = vadd.f32 %v472, %v576
        %v578 = vpop.f32.mrf.mxu0
        %v579 = vadd.f32 %v472, %v578
        %v580 = vpop.f32.mrf.mxu0
        %v581 = vadd.f32 %v477, %v580
        %v582 = vpop.f32.mrf.mxu0
        %v583 = vadd.f32 %v477, %v582
        %584 = vmatprep.mubr.bf16.mxu0 0
        %585 = vmatmul.mubr.bf16.gmra.mxu0 %v527
        %v586 = vpop.f32.mrf.mxu0
        %v587 = vadd.f32 %v482, %v586
        %v588 = vpop.f32.mrf.mxu0
        %v589 = vadd.f32 %v482, %v588
        %v590 = vpop.f32.mrf.mxu0
        %v591 = vadd.f32 %v487, %v590
        %v592 = vpop.f32.mrf.mxu0
        %v593 = vadd.f32 %v487, %v592
        %594 = vmatprep.mubr.bf16.mxu0 0
        %595 = vmatmul.mubr.bf16.gmra.mxu0 %v530
        %v596 = vpop.f32.mrf.mxu0
        %v597 = vadd.f32 %v492, %v596
        %v598 = vpop.f32.mrf.mxu0
        %v599 = vadd.f32 %v492, %v598
        %v600 = vpop.f32.mrf.mxu0
        %v601 = vadd.f32 %v497, %v600
        %v602 = vpop.f32.mrf.mxu0
        %v603 = vadd.f32 %v497, %v602
        %604 = vdwg.mxu0
        %v605 = vmax.f32 %v567, 0.0
        %v606 = vmax.f32 %v569, 0.0
        %v607 = vmax.f32 %v571, 0.0
        %v608 = vmax.f32 %v573, 0.0
        %v609 = vmax.f32 %v577, 0.0
        %v610 = vmax.f32 %v579, 0.0
        %v611 = vmax.f32 %v581, 0.0
        %v612 = vmax.f32 %v583, 0.0
        %v613 = vmax.f32 %v587, 0.0
        %v614 = vmax.f32 %v589, 0.0
        %v615 = vmax.f32 %v591, 0.0
        %v616 = vmax.f32 %v593, 0.0
        %v617 = vmax.f32 %v597, 0.0
        %v618 = vmax.f32 %v599, 0.0
        %v619 = vmax.f32 %v601, 0.0
        %v620 = vmax.f32 %v603, 0.0
        %s621 = scalar_lea.vmem %s3, 32
        %v622 = vld [vmem:[%s621] sm:$0xf]
        %v623 = vld [vmem:[%s621 + $0x4] sm:$0xf]
        %v624 = vld [vmem:[%s621 + $0x8] sm:$0xf]
        %v625 = vld [vmem:[%s621 + $0xc] sm:$0xf]
        %v626 = vld [vmem:[%s621 + $0x10] sm:$0xf]
        %v627 = vld [vmem:[%s621 + $0x14] sm:$0xf]
        %v628 = vld [vmem:[%s621 + $0x18] sm:$0xf]
        %v629 = vld [vmem:[%s621 + $0x1c] sm:$0xf]
        %v630 = vpack.c.bf16 %v607, %v605
        %v631 = vpack.c.bf16 %v608, %v606
        %v632 = vpack.c.bf16 %v611, %v609
        %v633 = vpack.c.bf16 %v612, %v610
        %v634 = vpack.c.bf16 %v615, %v613
        %v635 = vpack.c.bf16 %v616, %v614
        %v636 = vpack.c.bf16 %v619, %v617
        %v637 = vpack.c.bf16 %v620, %v618
        %s638 = scalar_lea.vmem %s4, 64
        %v639 = vld [vmem:[%s638] sm:$0xff]
        %v640 = vld [vmem:[%s638 + $0x8] sm:$0xff]
        %v641 = vld [vmem:[%s638 + $0x10] sm:$0xff]
        %v642 = vld [vmem:[%s638 + $0x18] sm:$0xff]
        %v643 = vld [vmem:[%s638 + $0x20] sm:$0xff]
        %v644 = vld [vmem:[%s638 + $0x28] sm:$0xff]
        %v645 = vld [vmem:[%s638 + $0x30] sm:$0xff]
        %v646 = vld [vmem:[%s638 + $0x38] sm:$0xff]
        %648 = vset.pattern.permute.xlu0 0
        %649 = vperm.xlu0 %648, %v639
        %v650 = vpop.permute.xlu0 %649
        %653 = vset.pattern.permute.xlu0 0
        %654 = vperm.xlu0 %653, %v640
        %v655 = vpop.permute.xlu0 %654
        %658 = vset.pattern.permute.xlu0 0
        %659 = vperm.xlu0 %658, %v641
        %v660 = vpop.permute.xlu0 %659
        %663 = vset.pattern.permute.xlu0 0
        %664 = vperm.xlu0 %663, %v642
        %v665 = vpop.permute.xlu0 %664
        %668 = vset.pattern.permute.xlu0 0
        %669 = vperm.xlu0 %668, %v643
        %v670 = vpop.permute.xlu0 %669
        %673 = vset.pattern.permute.xlu0 0
        %674 = vperm.xlu0 %673, %v644
        %v675 = vpop.permute.xlu0 %674
        %678 = vset.pattern.permute.xlu0 0
        %679 = vperm.xlu0 %678, %v645
        %v680 = vpop.permute.xlu0 %679
        %683 = vset.pattern.permute.xlu0 0
        %684 = vperm.xlu0 %683, %v646
        %v685 = vpop.permute.xlu0 %684
        %v695 = vunpack.c.l.b16 %v622
        %v696 = vunpack.c.l.b16 %v623
        %v697 = vunpack.c.l.b16 %v624
        %v698 = vunpack.c.l.b16 %v625
        %v699 = vunpack.c.l.b16 %v626
        %v700 = vunpack.c.l.b16 %v627
        %v701 = vunpack.c.l.b16 %v628
        %v702 = vunpack.c.l.b16 %v629
        %v703 = vpack.c.b16 %v696, %v695
        %v704 = vpack.c.b16 %v698, %v697
        %v705 = vpack.c.b16 %v700, %v699
        %v706 = vpack.c.b16 %v702, %v701
        %v708 = vsel %vm519, %v703, 0
        %v711 = vsel %vm519, %v704, 0
        %v714 = vsel %vm519, %v705, 0
        %v717 = vsel %vm519, %v706, 0
        %719 = vmatprep.subr.bf16.mxu0 0
        %720 = vmatpush1.bf16.msra.mxu0 0
        %721 = vmatprep.subr.bf16.mxu0 0
        %722 = vmatpush1.bf16.msra.mxu0 0
        %723 = vmatprep.subr.bf16.mxu0 0
        %724 = vmatpush1.bf16.msra.mxu0 0
        %725 = vmatprep.subr.bf16.mxu0 0
        %726 = vmatpush1.bf16.msra.mxu0 0
        %727 = vmatprep.subr.bf16.mxu0 %v637
        %728 = vmatpush1.bf16.msra.mxu0 %v636
        %729 = vmatprep.subr.bf16.mxu0 %v635
        %730 = vmatpush1.bf16.msra.mxu0 %v634
        %731 = vmatprep.subr.bf16.mxu0 %v633
        %732 = vmatpush1.bf16.msra.mxu0 %v632
        %733 = vmatprep.subr.bf16.mxu0 %v631
        %734 = vmatpush1.bf16.msra.mxu0 %v630
        %735 = vmatprep.subr.bf16.mxu0 0
        %736 = vmatpush2.bf16.msra.mxu0 0
        %737 = vmatprep.subr.bf16.mxu0 0
        %738 = vmatpush2.bf16.msra.mxu0 0
        %739 = vmatprep.subr.bf16.mxu0 0
        %740 = vmatpush2.bf16.msra.mxu0 0
        %741 = vmatprep.subr.bf16.mxu0 0
        %742 = vmatpush2.bf16.msra.mxu0 0
        %743 = vmatprep.subr.bf16.mxu0 0
        %744 = vmatpush2.bf16.msra.mxu0 0
        %745 = vmatprep.subr.bf16.mxu0 0
        %746 = vmatpush2.bf16.msra.mxu0 0
        %747 = vmatprep.subr.bf16.mxu0 0
        %748 = vmatpush2.bf16.msra.mxu0 0
        %749 = vmatprep.subr.bf16.mxu0 0
        %750 = vmatpush2.bf16.msra.mxu0 0
        %751 = vmatprep.mubr.bf16.mxu0 0
        %752 = vmatmul.mubr.bf16.gmra.mxu0 %v708
        %v753 = vpop.f32.mrf.mxu0
        %v754 = vadd.f32 %v650, %v753
        %v755 = vpop.f32.mrf.mxu0
        %v756 = vadd.f32 %v650, %v755
        %v757 = vpop.f32.mrf.mxu0
        %v758 = vadd.f32 %v655, %v757
        %v759 = vpop.f32.mrf.mxu0
        %v760 = vadd.f32 %v655, %v759
        %761 = vmatprep.mubr.bf16.mxu0 0
        %762 = vmatmul.mubr.bf16.gmra.mxu0 %v711
        %v763 = vpop.f32.mrf.mxu0
        %v764 = vadd.f32 %v660, %v763
        %v765 = vpop.f32.mrf.mxu0
        %v766 = vadd.f32 %v660, %v765
        %v767 = vpop.f32.mrf.mxu0
        %v768 = vadd.f32 %v665, %v767
        %v769 = vpop.f32.mrf.mxu0
        %v770 = vadd.f32 %v665, %v769
        %771 = vmatprep.mubr.bf16.mxu0 0
        %772 = vmatmul.mubr.bf16.gmra.mxu0 %v714
        %v773 = vpop.f32.mrf.mxu0
        %v774 = vadd.f32 %v670, %v773
        %v775 = vpop.f32.mrf.mxu0
        %v776 = vadd.f32 %v670, %v775
        %v777 = vpop.f32.mrf.mxu0
        %v778 = vadd.f32 %v675, %v777
        %v779 = vpop.f32.mrf.mxu0
        %v780 = vadd.f32 %v675, %v779
        %781 = vmatprep.mubr.bf16.mxu0 0
        %782 = vmatmul.mubr.bf16.gmra.mxu0 %v717
        %v783 = vpop.f32.mrf.mxu0
        %v784 = vadd.f32 %v680, %v783
        %v785 = vpop.f32.mrf.mxu0
        %v786 = vadd.f32 %v680, %v785
        %v787 = vpop.f32.mrf.mxu0
        %v788 = vadd.f32 %v685, %v787
        %v789 = vpop.f32.mrf.mxu0
        %v790 = vadd.f32 %v685, %v789
        %791 = vdwg.mxu0
        %v792 = vmax.f32 %v754, 0.0
        %v793 = vmax.f32 %v756, 0.0
        %v794 = vmax.f32 %v758, 0.0
        %v795 = vmax.f32 %v760, 0.0
        %v796 = vmax.f32 %v764, 0.0
        %v797 = vmax.f32 %v766, 0.0
        %v798 = vmax.f32 %v768, 0.0
        %v799 = vmax.f32 %v770, 0.0
        %v800 = vmax.f32 %v774, 0.0
        %v801 = vmax.f32 %v776, 0.0
        %v802 = vmax.f32 %v778, 0.0
        %v803 = vmax.f32 %v780, 0.0
        %v804 = vmax.f32 %v784, 0.0
        %v805 = vmax.f32 %v786, 0.0
        %v806 = vmax.f32 %v788, 0.0
        %v807 = vmax.f32 %v790, 0.0
        %s808 = scalar_lea.vmem %s3, 64
        %v809 = vld [vmem:[%s808] sm:$0xf]
        %v810 = vld [vmem:[%s808 + $0x4] sm:$0xf]
        %v811 = vld [vmem:[%s808 + $0x8] sm:$0xf]
        %v812 = vld [vmem:[%s808 + $0xc] sm:$0xf]
        %v813 = vld [vmem:[%s808 + $0x10] sm:$0xf]
        %v814 = vld [vmem:[%s808 + $0x14] sm:$0xf]
        %v815 = vld [vmem:[%s808 + $0x18] sm:$0xf]
        %v816 = vld [vmem:[%s808 + $0x1c] sm:$0xf]
        %v817 = vpack.c.bf16 %v794, %v792
        %v818 = vpack.c.bf16 %v795, %v793
        %v819 = vpack.c.bf16 %v798, %v796
        %v820 = vpack.c.bf16 %v799, %v797
        %v821 = vpack.c.bf16 %v802, %v800
        %v822 = vpack.c.bf16 %v803, %v801
        %v823 = vpack.c.bf16 %v806, %v804
        %v824 = vpack.c.bf16 %v807, %v805
        %s825 = scalar_lea.vmem %s4, 128
        %v826 = vld [vmem:[%s825] sm:$0xff]
        %v827 = vld [vmem:[%s825 + $0x8] sm:$0xff]
        %v828 = vld [vmem:[%s825 + $0x10] sm:$0xff]
        %v829 = vld [vmem:[%s825 + $0x18] sm:$0xff]
        %v830 = vld [vmem:[%s825 + $0x20] sm:$0xff]
        %v831 = vld [vmem:[%s825 + $0x28] sm:$0xff]
        %v832 = vld [vmem:[%s825 + $0x30] sm:$0xff]
        %v833 = vld [vmem:[%s825 + $0x38] sm:$0xff]
        %835 = vset.pattern.permute.xlu0 0
        %836 = vperm.xlu0 %835, %v826
        %v837 = vpop.permute.xlu0 %836
        %840 = vset.pattern.permute.xlu0 0
        %841 = vperm.xlu0 %840, %v827
        %v842 = vpop.permute.xlu0 %841
        %845 = vset.pattern.permute.xlu0 0
        %846 = vperm.xlu0 %845, %v828
        %v847 = vpop.permute.xlu0 %846
        %850 = vset.pattern.permute.xlu0 0
        %851 = vperm.xlu0 %850, %v829
        %v852 = vpop.permute.xlu0 %851
        %855 = vset.pattern.permute.xlu0 0
        %856 = vperm.xlu0 %855, %v830
        %v857 = vpop.permute.xlu0 %856
        %860 = vset.pattern.permute.xlu0 0
        %861 = vperm.xlu0 %860, %v831
        %v862 = vpop.permute.xlu0 %861
        %865 = vset.pattern.permute.xlu0 0
        %866 = vperm.xlu0 %865, %v832
        %v867 = vpop.permute.xlu0 %866
        %870 = vset.pattern.permute.xlu0 0
        %871 = vperm.xlu0 %870, %v833
        %v872 = vpop.permute.xlu0 %871
        %v882 = vunpack.c.l.b16 %v809
        %v883 = vunpack.c.l.b16 %v810
        %v884 = vunpack.c.l.b16 %v811
        %v885 = vunpack.c.l.b16 %v812
        %v886 = vunpack.c.l.b16 %v813
        %v887 = vunpack.c.l.b16 %v814
        %v888 = vunpack.c.l.b16 %v815
        %v889 = vunpack.c.l.b16 %v816
        %v890 = vpack.c.b16 %v883, %v882
        %v891 = vpack.c.b16 %v885, %v884
        %v892 = vpack.c.b16 %v887, %v886
        %v893 = vpack.c.b16 %v889, %v888
        %v895 = vsel %vm519, %v890, 0
        %v898 = vsel %vm519, %v891, 0
        %v901 = vsel %vm519, %v892, 0
        %v904 = vsel %vm519, %v893, 0
        %906 = vmatprep.subr.bf16.mxu0 0
        %907 = vmatpush1.bf16.msra.mxu0 0
        %908 = vmatprep.subr.bf16.mxu0 0
        %909 = vmatpush1.bf16.msra.mxu0 0
        %910 = vmatprep.subr.bf16.mxu0 0
        %911 = vmatpush1.bf16.msra.mxu0 0
        %912 = vmatprep.subr.bf16.mxu0 0
        %913 = vmatpush1.bf16.msra.mxu0 0
        %914 = vmatprep.subr.bf16.mxu0 %v824
        %915 = vmatpush1.bf16.msra.mxu0 %v823
        %916 = vmatprep.subr.bf16.mxu0 %v822
        %917 = vmatpush1.bf16.msra.mxu0 %v821
        %918 = vmatprep.subr.bf16.mxu0 %v820
        %919 = vmatpush1.bf16.msra.mxu0 %v819
        %920 = vmatprep.subr.bf16.mxu0 %v818
        %921 = vmatpush1.bf16.msra.mxu0 %v817
        %922 = vmatprep.subr.bf16.mxu0 0
        %923 = vmatpush2.bf16.msra.mxu0 0
        %924 = vmatprep.subr.bf16.mxu0 0
        %925 = vmatpush2.bf16.msra.mxu0 0
        %926 = vmatprep.subr.bf16.mxu0 0
        %927 = vmatpush2.bf16.msra.mxu0 0
        %928 = vmatprep.subr.bf16.mxu0 0
        %929 = vmatpush2.bf16.msra.mxu0 0
        %930 = vmatprep.subr.bf16.mxu0 0
        %931 = vmatpush2.bf16.msra.mxu0 0
        %932 = vmatprep.subr.bf16.mxu0 0
        %933 = vmatpush2.bf16.msra.mxu0 0
        %934 = vmatprep.subr.bf16.mxu0 0
        %935 = vmatpush2.bf16.msra.mxu0 0
        %936 = vmatprep.subr.bf16.mxu0 0
        %937 = vmatpush2.bf16.msra.mxu0 0
        %938 = vmatprep.mubr.bf16.mxu0 0
        %939 = vmatmul.mubr.bf16.gmra.mxu0 %v895
        %v940 = vpop.f32.mrf.mxu0
        %v941 = vadd.f32 %v837, %v940
        %v942 = vpop.f32.mrf.mxu0
        %v943 = vadd.f32 %v837, %v942
        %v944 = vpop.f32.mrf.mxu0
        %v945 = vadd.f32 %v842, %v944
        %v946 = vpop.f32.mrf.mxu0
        %v947 = vadd.f32 %v842, %v946
        %948 = vmatprep.mubr.bf16.mxu0 0
        %949 = vmatmul.mubr.bf16.gmra.mxu0 %v898
        %v950 = vpop.f32.mrf.mxu0
        %v951 = vadd.f32 %v847, %v950
        %v952 = vpop.f32.mrf.mxu0
        %v953 = vadd.f32 %v847, %v952
        %v954 = vpop.f32.mrf.mxu0
        %v955 = vadd.f32 %v852, %v954
        %v956 = vpop.f32.mrf.mxu0
        %v957 = vadd.f32 %v852, %v956
        %958 = vmatprep.mubr.bf16.mxu0 0
        %959 = vmatmul.mubr.bf16.gmra.mxu0 %v901
        %v960 = vpop.f32.mrf.mxu0
        %v961 = vadd.f32 %v857, %v960
        %v962 = vpop.f32.mrf.mxu0
        %v963 = vadd.f32 %v857, %v962
        %v964 = vpop.f32.mrf.mxu0
        %v965 = vadd.f32 %v862, %v964
        %v966 = vpop.f32.mrf.mxu0
        %v967 = vadd.f32 %v862, %v966
        %968 = vmatprep.mubr.bf16.mxu0 0
        %969 = vmatmul.mubr.bf16.gmra.mxu0 %v904
        %v970 = vpop.f32.mrf.mxu0
        %v971 = vadd.f32 %v867, %v970
        %v972 = vpop.f32.mrf.mxu0
        %v973 = vadd.f32 %v867, %v972
        %v974 = vpop.f32.mrf.mxu0
        %v975 = vadd.f32 %v872, %v974
        %v976 = vpop.f32.mrf.mxu0
        %v977 = vadd.f32 %v872, %v976
        %978 = vdwg.mxu0
        %v979 = vmax.f32 %v941, 0.0
        %v980 = vmax.f32 %v943, 0.0
        %v981 = vmax.f32 %v945, 0.0
        %v982 = vmax.f32 %v947, 0.0
        %v983 = vmax.f32 %v951, 0.0
        %v984 = vmax.f32 %v953, 0.0
        %v985 = vmax.f32 %v955, 0.0
        %v986 = vmax.f32 %v957, 0.0
        %v987 = vmax.f32 %v961, 0.0
        %v988 = vmax.f32 %v963, 0.0
        %v989 = vmax.f32 %v965, 0.0
        %v990 = vmax.f32 %v967, 0.0
        %v991 = vmax.f32 %v971, 0.0
        %v992 = vmax.f32 %v973, 0.0
        %v993 = vmax.f32 %v975, 0.0
        %v994 = vmax.f32 %v977, 0.0
        %s995 = scalar_lea.vmem %s3, 96
        %v996 = vld [vmem:[%s995] sm:$0xf]
        %v997 = vld [vmem:[%s995 + $0x4] sm:$0xf]
        %v998 = vld [vmem:[%s995 + $0x8] sm:$0xf]
        %v999 = vld [vmem:[%s995 + $0xc] sm:$0xf]
        %v1000 = vld [vmem:[%s995 + $0x10] sm:$0xf]
        %v1001 = vld [vmem:[%s995 + $0x14] sm:$0xf]
        %v1002 = vld [vmem:[%s995 + $0x18] sm:$0xf]
        %v1003 = vld [vmem:[%s995 + $0x1c] sm:$0xf]
        %v1004 = vpack.c.bf16 %v981, %v979
        %v1005 = vpack.c.bf16 %v982, %v980
        %v1006 = vpack.c.bf16 %v985, %v983
        %v1007 = vpack.c.bf16 %v986, %v984
        %v1008 = vpack.c.bf16 %v989, %v987
        %v1009 = vpack.c.bf16 %v990, %v988
        %v1010 = vpack.c.bf16 %v993, %v991
        %v1011 = vpack.c.bf16 %v994, %v992
        %s1012 = scalar_lea.vmem %s4, 192
        %v1013 = vld [vmem:[%s1012] sm:$0xff]
        %v1014 = vld [vmem:[%s1012 + $0x8] sm:$0xff]
        %v1015 = vld [vmem:[%s1012 + $0x10] sm:$0xff]
        %v1016 = vld [vmem:[%s1012 + $0x18] sm:$0xff]
        %v1017 = vld [vmem:[%s1012 + $0x20] sm:$0xff]
        %v1018 = vld [vmem:[%s1012 + $0x28] sm:$0xff]
        %v1019 = vld [vmem:[%s1012 + $0x30] sm:$0xff]
        %v1020 = vld [vmem:[%s1012 + $0x38] sm:$0xff]
        %1022 = vset.pattern.permute.xlu0 0
        %1023 = vperm.xlu0 %1022, %v1013
        %v1024 = vpop.permute.xlu0 %1023
        %1027 = vset.pattern.permute.xlu0 0
        %1028 = vperm.xlu0 %1027, %v1014
        %v1029 = vpop.permute.xlu0 %1028
        %1032 = vset.pattern.permute.xlu0 0
        %1033 = vperm.xlu0 %1032, %v1015
        %v1034 = vpop.permute.xlu0 %1033
        %1037 = vset.pattern.permute.xlu0 0
        %1038 = vperm.xlu0 %1037, %v1016
        %v1039 = vpop.permute.xlu0 %1038
        %1042 = vset.pattern.permute.xlu0 0
        %1043 = vperm.xlu0 %1042, %v1017
        %v1044 = vpop.permute.xlu0 %1043
        %1047 = vset.pattern.permute.xlu0 0
        %1048 = vperm.xlu0 %1047, %v1018
        %v1049 = vpop.permute.xlu0 %1048
        %1052 = vset.pattern.permute.xlu0 0
        %1053 = vperm.xlu0 %1052, %v1019
        %v1054 = vpop.permute.xlu0 %1053
        %1057 = vset.pattern.permute.xlu0 0
        %1058 = vperm.xlu0 %1057, %v1020
        %v1059 = vpop.permute.xlu0 %1058
        %v1069 = vunpack.c.l.b16 %v996
        %v1070 = vunpack.c.l.b16 %v997
        %v1071 = vunpack.c.l.b16 %v998
        %v1072 = vunpack.c.l.b16 %v999
        %v1073 = vunpack.c.l.b16 %v1000
        %v1074 = vunpack.c.l.b16 %v1001
        %v1075 = vunpack.c.l.b16 %v1002
        %v1076 = vunpack.c.l.b16 %v1003
        %v1077 = vpack.c.b16 %v1070, %v1069
        %v1078 = vpack.c.b16 %v1072, %v1071
        %v1079 = vpack.c.b16 %v1074, %v1073
        %v1080 = vpack.c.b16 %v1076, %v1075
        %v1082 = vsel %vm519, %v1077, 0
        %v1085 = vsel %vm519, %v1078, 0
        %v1088 = vsel %vm519, %v1079, 0
        %v1091 = vsel %vm519, %v1080, 0
        %1093 = vmatprep.subr.bf16.mxu0 0
        %1094 = vmatpush1.bf16.msra.mxu0 0
        %1095 = vmatprep.subr.bf16.mxu0 0
        %1096 = vmatpush1.bf16.msra.mxu0 0
        %1097 = vmatprep.subr.bf16.mxu0 0
        %1098 = vmatpush1.bf16.msra.mxu0 0
        %1099 = vmatprep.subr.bf16.mxu0 0
        %1100 = vmatpush1.bf16.msra.mxu0 0
        %1101 = vmatprep.subr.bf16.mxu0 %v1011
        %1102 = vmatpush1.bf16.msra.mxu0 %v1010
        %1103 = vmatprep.subr.bf16.mxu0 %v1009
        %1104 = vmatpush1.bf16.msra.mxu0 %v1008
        %1105 = vmatprep.subr.bf16.mxu0 %v1007
        %1106 = vmatpush1.bf16.msra.mxu0 %v1006
        %1107 = vmatprep.subr.bf16.mxu0 %v1005
        %1108 = vmatpush1.bf16.msra.mxu0 %v1004
        %1109 = vmatprep.subr.bf16.mxu0 0
        %1110 = vmatpush2.bf16.msra.mxu0 0
        %1111 = vmatprep.subr.bf16.mxu0 0
        %1112 = vmatpush2.bf16.msra.mxu0 0
        %1113 = vmatprep.subr.bf16.mxu0 0
        %1114 = vmatpush2.bf16.msra.mxu0 0
        %1115 = vmatprep.subr.bf16.mxu0 0
        %1116 = vmatpush2.bf16.msra.mxu0 0
        %1117 = vmatprep.subr.bf16.mxu0 0
        %1118 = vmatpush2.bf16.msra.mxu0 0
        %1119 = vmatprep.subr.bf16.mxu0 0
        %1120 = vmatpush2.bf16.msra.mxu0 0
        %1121 = vmatprep.subr.bf16.mxu0 0
        %1122 = vmatpush2.bf16.msra.mxu0 0
        %1123 = vmatprep.subr.bf16.mxu0 0
        %1124 = vmatpush2.bf16.msra.mxu0 0
        %1125 = vmatprep.mubr.bf16.mxu0 0
        %1126 = vmatmul.mubr.bf16.gmra.mxu0 %v1082
        %v1127 = vpop.f32.mrf.mxu0
        %v1128 = vadd.f32 %v1024, %v1127
        %v1129 = vpop.f32.mrf.mxu0
        %v1130 = vadd.f32 %v1024, %v1129
        %v1131 = vpop.f32.mrf.mxu0
        %v1132 = vadd.f32 %v1029, %v1131
        %v1133 = vpop.f32.mrf.mxu0
        %v1134 = vadd.f32 %v1029, %v1133
        %1135 = vmatprep.mubr.bf16.mxu0 0
        %1136 = vmatmul.mubr.bf16.gmra.mxu0 %v1085
        %v1137 = vpop.f32.mrf.mxu0
        %v1138 = vadd.f32 %v1034, %v1137
        %v1139 = vpop.f32.mrf.mxu0
        %v1140 = vadd.f32 %v1034, %v1139
        %v1141 = vpop.f32.mrf.mxu0
        %v1142 = vadd.f32 %v1039, %v1141
        %v1143 = vpop.f32.mrf.mxu0
        %v1144 = vadd.f32 %v1039, %v1143
        %1145 = vmatprep.mubr.bf16.mxu0 0
        %1146 = vmatmul.mubr.bf16.gmra.mxu0 %v1088
        %v1147 = vpop.f32.mrf.mxu0
        %v1148 = vadd.f32 %v1044, %v1147
        %v1149 = vpop.f32.mrf.mxu0
        %v1150 = vadd.f32 %v1044, %v1149
        %v1151 = vpop.f32.mrf.mxu0
        %v1152 = vadd.f32 %v1049, %v1151
        %v1153 = vpop.f32.mrf.mxu0
        %v1154 = vadd.f32 %v1049, %v1153
        %1155 = vmatprep.mubr.bf16.mxu0 0
        %1156 = vmatmul.mubr.bf16.gmra.mxu0 %v1091
        %v1157 = vpop.f32.mrf.mxu0
        %v1158 = vadd.f32 %v1054, %v1157
        %v1159 = vpop.f32.mrf.mxu0
        %v1160 = vadd.f32 %v1054, %v1159
        %v1161 = vpop.f32.mrf.mxu0
        %v1162 = vadd.f32 %v1059, %v1161
        %v1163 = vpop.f32.mrf.mxu0
        %v1164 = vadd.f32 %v1059, %v1163
        %1165 = vdwg.mxu0
        %v1166 = vmax.f32 %v1128, 0.0
        %v1167 = vmax.f32 %v1130, 0.0
        %v1168 = vmax.f32 %v1132, 0.0
        %v1169 = vmax.f32 %v1134, 0.0
        %v1170 = vmax.f32 %v1138, 0.0
        %v1171 = vmax.f32 %v1140, 0.0
        %v1172 = vmax.f32 %v1142, 0.0
        %v1173 = vmax.f32 %v1144, 0.0
        %v1174 = vmax.f32 %v1148, 0.0
        %v1175 = vmax.f32 %v1150, 0.0
        %v1176 = vmax.f32 %v1152, 0.0
        %v1177 = vmax.f32 %v1154, 0.0
        %v1178 = vmax.f32 %v1158, 0.0
        %v1179 = vmax.f32 %v1160, 0.0
        %v1180 = vmax.f32 %v1162, 0.0
        %v1181 = vmax.f32 %v1164, 0.0
        %s1182 = scalar_lea.vmem %s3, 128
        %v1183 = vld [vmem:[%s1182] sm:$0xf]
        %v1184 = vld [vmem:[%s1182 + $0x4] sm:$0xf]
        %v1185 = vld [vmem:[%s1182 + $0x8] sm:$0xf]
        %v1186 = vld [vmem:[%s1182 + $0xc] sm:$0xf]
        %v1187 = vld [vmem:[%s1182 + $0x10] sm:$0xf]
        %v1188 = vld [vmem:[%s1182 + $0x14] sm:$0xf]
        %v1189 = vld [vmem:[%s1182 + $0x18] sm:$0xf]
        %v1190 = vld [vmem:[%s1182 + $0x1c] sm:$0xf]
        %v1191 = vpack.c.bf16 %v1168, %v1166
        %v1192 = vpack.c.bf16 %v1169, %v1167
        %v1193 = vpack.c.bf16 %v1172, %v1170
        %v1194 = vpack.c.bf16 %v1173, %v1171
        %v1195 = vpack.c.bf16 %v1176, %v1174
        %v1196 = vpack.c.bf16 %v1177, %v1175
        %v1197 = vpack.c.bf16 %v1180, %v1178
        %v1198 = vpack.c.bf16 %v1181, %v1179
        %s1199 = scalar_lea.vmem %s4, 256
        %v1200 = vld [vmem:[%s1199] sm:$0xff]
        %v1201 = vld [vmem:[%s1199 + $0x8] sm:$0xff]
        %v1202 = vld [vmem:[%s1199 + $0x10] sm:$0xff]
        %v1203 = vld [vmem:[%s1199 + $0x18] sm:$0xff]
        %v1204 = vld [vmem:[%s1199 + $0x20] sm:$0xff]
        %v1205 = vld [vmem:[%s1199 + $0x28] sm:$0xff]
        %v1206 = vld [vmem:[%s1199 + $0x30] sm:$0xff]
        %v1207 = vld [vmem:[%s1199 + $0x38] sm:$0xff]
        %1209 = vset.pattern.permute.xlu0 0
        %1210 = vperm.xlu0 %1209, %v1200
        %v1211 = vpop.permute.xlu0 %1210
        %1214 = vset.pattern.permute.xlu0 0
        %1215 = vperm.xlu0 %1214, %v1201
        %v1216 = vpop.permute.xlu0 %1215
        %1219 = vset.pattern.permute.xlu0 0
        %1220 = vperm.xlu0 %1219, %v1202
        %v1221 = vpop.permute.xlu0 %1220
        %1224 = vset.pattern.permute.xlu0 0
        %1225 = vperm.xlu0 %1224, %v1203
        %v1226 = vpop.permute.xlu0 %1225
        %1229 = vset.pattern.permute.xlu0 0
        %1230 = vperm.xlu0 %1229, %v1204
        %v1231 = vpop.permute.xlu0 %1230
        %1234 = vset.pattern.permute.xlu0 0
        %1235 = vperm.xlu0 %1234, %v1205
        %v1236 = vpop.permute.xlu0 %1235
        %1239 = vset.pattern.permute.xlu0 0
        %1240 = vperm.xlu0 %1239, %v1206
        %v1241 = vpop.permute.xlu0 %1240
        %1244 = vset.pattern.permute.xlu0 0
        %1245 = vperm.xlu0 %1244, %v1207
        %v1246 = vpop.permute.xlu0 %1245
        %v1256 = vunpack.c.l.b16 %v1183
        %v1257 = vunpack.c.l.b16 %v1184
        %v1258 = vunpack.c.l.b16 %v1185
        %v1259 = vunpack.c.l.b16 %v1186
        %v1260 = vunpack.c.l.b16 %v1187
        %v1261 = vunpack.c.l.b16 %v1188
        %v1262 = vunpack.c.l.b16 %v1189
        %v1263 = vunpack.c.l.b16 %v1190
        %v1264 = vpack.c.b16 %v1257, %v1256
        %v1265 = vpack.c.b16 %v1259, %v1258
        %v1266 = vpack.c.b16 %v1261, %v1260
        %v1267 = vpack.c.b16 %v1263, %v1262
        %v1269 = vsel %vm519, %v1264, 0
        %v1272 = vsel %vm519, %v1265, 0
        %v1275 = vsel %vm519, %v1266, 0
        %v1278 = vsel %vm519, %v1267, 0
        %1280 = vmatprep.subr.bf16.mxu0 0
        %1281 = vmatpush1.bf16.msra.mxu0 0
        %1282 = vmatprep.subr.bf16.mxu0 0
        %1283 = vmatpush1.bf16.msra.mxu0 0
        %1284 = vmatprep.subr.bf16.mxu0 0
        %1285 = vmatpush1.bf16.msra.mxu0 0
        %1286 = vmatprep.subr.bf16.mxu0 0
        %1287 = vmatpush1.bf16.msra.mxu0 0
        %1288 = vmatprep.subr.bf16.mxu0 %v1198
        %1289 = vmatpush1.bf16.msra.mxu0 %v1197
        %1290 = vmatprep.subr.bf16.mxu0 %v1196
        %1291 = vmatpush1.bf16.msra.mxu0 %v1195
        %1292 = vmatprep.subr.bf16.mxu0 %v1194
        %1293 = vmatpush1.bf16.msra.mxu0 %v1193
        %1294 = vmatprep.subr.bf16.mxu0 %v1192
        %1295 = vmatpush1.bf16.msra.mxu0 %v1191
        %1296 = vmatprep.subr.bf16.mxu0 0
        %1297 = vmatpush2.bf16.msra.mxu0 0
        %1298 = vmatprep.subr.bf16.mxu0 0
        %1299 = vmatpush2.bf16.msra.mxu0 0
        %1300 = vmatprep.subr.bf16.mxu0 0
        %1301 = vmatpush2.bf16.msra.mxu0 0
        %1302 = vmatprep.subr.bf16.mxu0 0
        %1303 = vmatpush2.bf16.msra.mxu0 0
        %1304 = vmatprep.subr.bf16.mxu0 0
        %1305 = vmatpush2.bf16.msra.mxu0 0
        %1306 = vmatprep.subr.bf16.mxu0 0
        %1307 = vmatpush2.bf16.msra.mxu0 0
        %1308 = vmatprep.subr.bf16.mxu0 0
        %1309 = vmatpush2.bf16.msra.mxu0 0
        %1310 = vmatprep.subr.bf16.mxu0 0
        %1311 = vmatpush2.bf16.msra.mxu0 0
        %1312 = vmatprep.mubr.bf16.mxu0 0
        %1313 = vmatmul.mubr.bf16.gmra.mxu0 %v1269
        %v1314 = vpop.f32.mrf.mxu0
        %v1315 = vadd.f32 %v1211, %v1314
        %v1316 = vpop.f32.mrf.mxu0
        %v1317 = vadd.f32 %v1211, %v1316
        %v1318 = vpop.f32.mrf.mxu0
        %v1319 = vadd.f32 %v1216, %v1318
        %v1320 = vpop.f32.mrf.mxu0
        %v1321 = vadd.f32 %v1216, %v1320
        %1322 = vmatprep.mubr.bf16.mxu0 0
        %1323 = vmatmul.mubr.bf16.gmra.mxu0 %v1272
        %v1324 = vpop.f32.mrf.mxu0
        %v1325 = vadd.f32 %v1221, %v1324
        %v1326 = vpop.f32.mrf.mxu0
        %v1327 = vadd.f32 %v1221, %v1326
        %v1328 = vpop.f32.mrf.mxu0
        %v1329 = vadd.f32 %v1226, %v1328
        %v1330 = vpop.f32.mrf.mxu0
        %v1331 = vadd.f32 %v1226, %v1330
        %1332 = vmatprep.mubr.bf16.mxu0 0
        %1333 = vmatmul.mubr.bf16.gmra.mxu0 %v1275
        %v1334 = vpop.f32.mrf.mxu0
        %v1335 = vadd.f32 %v1231, %v1334
        %v1336 = vpop.f32.mrf.mxu0
        %v1337 = vadd.f32 %v1231, %v1336
        %v1338 = vpop.f32.mrf.mxu0
        %v1339 = vadd.f32 %v1236, %v1338
        %v1340 = vpop.f32.mrf.mxu0
        %v1341 = vadd.f32 %v1236, %v1340
        %1342 = vmatprep.mubr.bf16.mxu0 0
        %1343 = vmatmul.mubr.bf16.gmra.mxu0 %v1278
        %v1344 = vpop.f32.mrf.mxu0
        %v1345 = vadd.f32 %v1241, %v1344
        %v1346 = vpop.f32.mrf.mxu0
        %v1347 = vadd.f32 %v1241, %v1346
        %v1348 = vpop.f32.mrf.mxu0
        %v1349 = vadd.f32 %v1246, %v1348
        %v1350 = vpop.f32.mrf.mxu0
        %v1351 = vadd.f32 %v1246, %v1350
        %1352 = vdwg.mxu0
        %v1353 = vmax.f32 %v1315, 0.0
        %v1354 = vmax.f32 %v1317, 0.0
        %v1355 = vmax.f32 %v1319, 0.0
        %v1356 = vmax.f32 %v1321, 0.0
        %v1357 = vmax.f32 %v1325, 0.0
        %v1358 = vmax.f32 %v1327, 0.0
        %v1359 = vmax.f32 %v1329, 0.0
        %v1360 = vmax.f32 %v1331, 0.0
        %v1361 = vmax.f32 %v1335, 0.0
        %v1362 = vmax.f32 %v1337, 0.0
        %v1363 = vmax.f32 %v1339, 0.0
        %v1364 = vmax.f32 %v1341, 0.0
        %v1365 = vmax.f32 %v1345, 0.0
        %v1366 = vmax.f32 %v1347, 0.0
        %v1367 = vmax.f32 %v1349, 0.0
        %v1368 = vmax.f32 %v1351, 0.0
        %s1369 = scalar_lea.vmem %s3, 160
        %v1370 = vld [vmem:[%s1369] sm:$0xf]
        %v1371 = vld [vmem:[%s1369 + $0x4] sm:$0xf]
        %v1372 = vld [vmem:[%s1369 + $0x8] sm:$0xf]
        %v1373 = vld [vmem:[%s1369 + $0xc] sm:$0xf]
        %v1374 = vld [vmem:[%s1369 + $0x10] sm:$0xf]
        %v1375 = vld [vmem:[%s1369 + $0x14] sm:$0xf]
        %v1376 = vld [vmem:[%s1369 + $0x18] sm:$0xf]
        %v1377 = vld [vmem:[%s1369 + $0x1c] sm:$0xf]
        %v1378 = vpack.c.bf16 %v1355, %v1353
        %v1379 = vpack.c.bf16 %v1356, %v1354
        %v1380 = vpack.c.bf16 %v1359, %v1357
        %v1381 = vpack.c.bf16 %v1360, %v1358
        %v1382 = vpack.c.bf16 %v1363, %v1361
        %v1383 = vpack.c.bf16 %v1364, %v1362
        %v1384 = vpack.c.bf16 %v1367, %v1365
        %v1385 = vpack.c.bf16 %v1368, %v1366
        %s1386 = scalar_lea.vmem %s4, 320
        %v1387 = vld [vmem:[%s1386] sm:$0xff]
        %v1388 = vld [vmem:[%s1386 + $0x8] sm:$0xff]
        %v1389 = vld [vmem:[%s1386 + $0x10] sm:$0xff]
        %v1390 = vld [vmem:[%s1386 + $0x18] sm:$0xff]
        %v1391 = vld [vmem:[%s1386 + $0x20] sm:$0xff]
        %v1392 = vld [vmem:[%s1386 + $0x28] sm:$0xff]
        %v1393 = vld [vmem:[%s1386 + $0x30] sm:$0xff]
        %v1394 = vld [vmem:[%s1386 + $0x38] sm:$0xff]
        %1396 = vset.pattern.permute.xlu0 0
        %1397 = vperm.xlu0 %1396, %v1387
        %v1398 = vpop.permute.xlu0 %1397
        %1401 = vset.pattern.permute.xlu0 0
        %1402 = vperm.xlu0 %1401, %v1388
        %v1403 = vpop.permute.xlu0 %1402
        %1406 = vset.pattern.permute.xlu0 0
        %1407 = vperm.xlu0 %1406, %v1389
        %v1408 = vpop.permute.xlu0 %1407
        %1411 = vset.pattern.permute.xlu0 0
        %1412 = vperm.xlu0 %1411, %v1390
        %v1413 = vpop.permute.xlu0 %1412
        %1416 = vset.pattern.permute.xlu0 0
        %1417 = vperm.xlu0 %1416, %v1391
        %v1418 = vpop.permute.xlu0 %1417
        %1421 = vset.pattern.permute.xlu0 0
        %1422 = vperm.xlu0 %1421, %v1392
        %v1423 = vpop.permute.xlu0 %1422
        %1426 = vset.pattern.permute.xlu0 0
        %1427 = vperm.xlu0 %1426, %v1393
        %v1428 = vpop.permute.xlu0 %1427
        %1431 = vset.pattern.permute.xlu0 0
        %1432 = vperm.xlu0 %1431, %v1394
        %v1433 = vpop.permute.xlu0 %1432
        %v1443 = vunpack.c.l.b16 %v1370
        %v1444 = vunpack.c.l.b16 %v1371
        %v1445 = vunpack.c.l.b16 %v1372
        %v1446 = vunpack.c.l.b16 %v1373
        %v1447 = vunpack.c.l.b16 %v1374
        %v1448 = vunpack.c.l.b16 %v1375
        %v1449 = vunpack.c.l.b16 %v1376
        %v1450 = vunpack.c.l.b16 %v1377
        %v1451 = vpack.c.b16 %v1444, %v1443
        %v1452 = vpack.c.b16 %v1446, %v1445
        %v1453 = vpack.c.b16 %v1448, %v1447
        %v1454 = vpack.c.b16 %v1450, %v1449
        %v1456 = vsel %vm519, %v1451, 0
        %v1459 = vsel %vm519, %v1452, 0
        %v1462 = vsel %vm519, %v1453, 0
        %v1465 = vsel %vm519, %v1454, 0
        %1467 = vmatprep.subr.bf16.mxu0 0
        %1468 = vmatpush1.bf16.msra.mxu0 0
        %1469 = vmatprep.subr.bf16.mxu0 0
        %1470 = vmatpush1.bf16.msra.mxu0 0
        %1471 = vmatprep.subr.bf16.mxu0 0
        %1472 = vmatpush1.bf16.msra.mxu0 0
        %1473 = vmatprep.subr.bf16.mxu0 0
        %1474 = vmatpush1.bf16.msra.mxu0 0
        %1475 = vmatprep.subr.bf16.mxu0 %v1385
        %1476 = vmatpush1.bf16.msra.mxu0 %v1384
        %1477 = vmatprep.subr.bf16.mxu0 %v1383
        %1478 = vmatpush1.bf16.msra.mxu0 %v1382
        %1479 = vmatprep.subr.bf16.mxu0 %v1381
        %1480 = vmatpush1.bf16.msra.mxu0 %v1380
        %1481 = vmatprep.subr.bf16.mxu0 %v1379
        %1482 = vmatpush1.bf16.msra.mxu0 %v1378
        %1483 = vmatprep.subr.bf16.mxu0 0
        %1484 = vmatpush2.bf16.msra.mxu0 0
        %1485 = vmatprep.subr.bf16.mxu0 0
        %1486 = vmatpush2.bf16.msra.mxu0 0
        %1487 = vmatprep.subr.bf16.mxu0 0
        %1488 = vmatpush2.bf16.msra.mxu0 0
        %1489 = vmatprep.subr.bf16.mxu0 0
        %1490 = vmatpush2.bf16.msra.mxu0 0
        %1491 = vmatprep.subr.bf16.mxu0 0
        %1492 = vmatpush2.bf16.msra.mxu0 0
        %1493 = vmatprep.subr.bf16.mxu0 0
        %1494 = vmatpush2.bf16.msra.mxu0 0
        %1495 = vmatprep.subr.bf16.mxu0 0
        %1496 = vmatpush2.bf16.msra.mxu0 0
        %1497 = vmatprep.subr.bf16.mxu0 0
        %1498 = vmatpush2.bf16.msra.mxu0 0
        %1499 = vmatprep.mubr.bf16.mxu0 0
        %1500 = vmatmul.mubr.bf16.gmra.mxu0 %v1456
        %v1501 = vpop.f32.mrf.mxu0
        %v1502 = vadd.f32 %v1398, %v1501
        %v1503 = vpop.f32.mrf.mxu0
        %v1504 = vadd.f32 %v1398, %v1503
        %v1505 = vpop.f32.mrf.mxu0
        %v1506 = vadd.f32 %v1403, %v1505
        %v1507 = vpop.f32.mrf.mxu0
        %v1508 = vadd.f32 %v1403, %v1507
        %1509 = vmatprep.mubr.bf16.mxu0 0
        %1510 = vmatmul.mubr.bf16.gmra.mxu0 %v1459
        %v1511 = vpop.f32.mrf.mxu0
        %v1512 = vadd.f32 %v1408, %v1511
        %v1513 = vpop.f32.mrf.mxu0
        %v1514 = vadd.f32 %v1408, %v1513
        %v1515 = vpop.f32.mrf.mxu0
        %v1516 = vadd.f32 %v1413, %v1515
        %v1517 = vpop.f32.mrf.mxu0
        %v1518 = vadd.f32 %v1413, %v1517
        %1519 = vmatprep.mubr.bf16.mxu0 0
        %1520 = vmatmul.mubr.bf16.gmra.mxu0 %v1462
        %v1521 = vpop.f32.mrf.mxu0
        %v1522 = vadd.f32 %v1418, %v1521
        %v1523 = vpop.f32.mrf.mxu0
        %v1524 = vadd.f32 %v1418, %v1523
        %v1525 = vpop.f32.mrf.mxu0
        %v1526 = vadd.f32 %v1423, %v1525
        %v1527 = vpop.f32.mrf.mxu0
        %v1528 = vadd.f32 %v1423, %v1527
        %1529 = vmatprep.mubr.bf16.mxu0 0
        %1530 = vmatmul.mubr.bf16.gmra.mxu0 %v1465
        %v1531 = vpop.f32.mrf.mxu0
        %v1532 = vadd.f32 %v1428, %v1531
        %v1533 = vpop.f32.mrf.mxu0
        %v1534 = vadd.f32 %v1428, %v1533
        %v1535 = vpop.f32.mrf.mxu0
        %v1536 = vadd.f32 %v1433, %v1535
        %v1537 = vpop.f32.mrf.mxu0
        %v1538 = vadd.f32 %v1433, %v1537
        %1539 = vdwg.mxu0
        %v1540 = vmax.f32 %v1502, 0.0
        %v1541 = vmax.f32 %v1504, 0.0
        %v1542 = vmax.f32 %v1506, 0.0
        %v1543 = vmax.f32 %v1508, 0.0
        %v1544 = vmax.f32 %v1512, 0.0
        %v1545 = vmax.f32 %v1514, 0.0
        %v1546 = vmax.f32 %v1516, 0.0
        %v1547 = vmax.f32 %v1518, 0.0
        %v1548 = vmax.f32 %v1522, 0.0
        %v1549 = vmax.f32 %v1524, 0.0
        %v1550 = vmax.f32 %v1526, 0.0
        %v1551 = vmax.f32 %v1528, 0.0
        %v1552 = vmax.f32 %v1532, 0.0
        %v1553 = vmax.f32 %v1534, 0.0
        %v1554 = vmax.f32 %v1536, 0.0
        %v1555 = vmax.f32 %v1538, 0.0
        %s1556 = scalar_lea.vmem %s3, 192
        %v1557 = vld [vmem:[%s1556] sm:$0xf]
        %v1558 = vld [vmem:[%s1556 + $0x4] sm:$0xf]
        %v1559 = vld [vmem:[%s1556 + $0x8] sm:$0xf]
        %v1560 = vld [vmem:[%s1556 + $0xc] sm:$0xf]
        %v1561 = vld [vmem:[%s1556 + $0x10] sm:$0xf]
        %v1562 = vld [vmem:[%s1556 + $0x14] sm:$0xf]
        %v1563 = vld [vmem:[%s1556 + $0x18] sm:$0xf]
        %v1564 = vld [vmem:[%s1556 + $0x1c] sm:$0xf]
        %v1565 = vpack.c.bf16 %v1542, %v1540
        %v1566 = vpack.c.bf16 %v1543, %v1541
        %v1567 = vpack.c.bf16 %v1546, %v1544
        %v1568 = vpack.c.bf16 %v1547, %v1545
        %v1569 = vpack.c.bf16 %v1550, %v1548
        %v1570 = vpack.c.bf16 %v1551, %v1549
        %v1571 = vpack.c.bf16 %v1554, %v1552
        %v1572 = vpack.c.bf16 %v1555, %v1553
        %s1573 = scalar_lea.vmem %s4, 384
        %v1574 = vld [vmem:[%s1573] sm:$0xff]
        %v1575 = vld [vmem:[%s1573 + $0x8] sm:$0xff]
        %v1576 = vld [vmem:[%s1573 + $0x10] sm:$0xff]
        %v1577 = vld [vmem:[%s1573 + $0x18] sm:$0xff]
        %v1578 = vld [vmem:[%s1573 + $0x20] sm:$0xff]
        %v1579 = vld [vmem:[%s1573 + $0x28] sm:$0xff]
        %v1580 = vld [vmem:[%s1573 + $0x30] sm:$0xff]
        %v1581 = vld [vmem:[%s1573 + $0x38] sm:$0xff]
        %1583 = vset.pattern.permute.xlu0 0
        %1584 = vperm.xlu0 %1583, %v1574
        %v1585 = vpop.permute.xlu0 %1584
        %1588 = vset.pattern.permute.xlu0 0
        %1589 = vperm.xlu0 %1588, %v1575
        %v1590 = vpop.permute.xlu0 %1589
        %1593 = vset.pattern.permute.xlu0 0
        %1594 = vperm.xlu0 %1593, %v1576
        %v1595 = vpop.permute.xlu0 %1594
        %1598 = vset.pattern.permute.xlu0 0
        %1599 = vperm.xlu0 %1598, %v1577
        %v1600 = vpop.permute.xlu0 %1599
        %1603 = vset.pattern.permute.xlu0 0
        %1604 = vperm.xlu0 %1603, %v1578
        %v1605 = vpop.permute.xlu0 %1604
        %1608 = vset.pattern.permute.xlu0 0
        %1609 = vperm.xlu0 %1608, %v1579
        %v1610 = vpop.permute.xlu0 %1609
        %1613 = vset.pattern.permute.xlu0 0
        %1614 = vperm.xlu0 %1613, %v1580
        %v1615 = vpop.permute.xlu0 %1614
        %1618 = vset.pattern.permute.xlu0 0
        %1619 = vperm.xlu0 %1618, %v1581
        %v1620 = vpop.permute.xlu0 %1619
        %v1630 = vunpack.c.l.b16 %v1557
        %v1631 = vunpack.c.l.b16 %v1558
        %v1632 = vunpack.c.l.b16 %v1559
        %v1633 = vunpack.c.l.b16 %v1560
        %v1634 = vunpack.c.l.b16 %v1561
        %v1635 = vunpack.c.l.b16 %v1562
        %v1636 = vunpack.c.l.b16 %v1563
        %v1637 = vunpack.c.l.b16 %v1564
        %v1638 = vpack.c.b16 %v1631, %v1630
        %v1639 = vpack.c.b16 %v1633, %v1632
        %v1640 = vpack.c.b16 %v1635, %v1634
        %v1641 = vpack.c.b16 %v1637, %v1636
        %v1643 = vsel %vm519, %v1638, 0
        %v1646 = vsel %vm519, %v1639, 0
        %v1649 = vsel %vm519, %v1640, 0
        %v1652 = vsel %vm519, %v1641, 0
        %1654 = vmatprep.subr.bf16.mxu0 0
        %1655 = vmatpush1.bf16.msra.mxu0 0
        %1656 = vmatprep.subr.bf16.mxu0 0
        %1657 = vmatpush1.bf16.msra.mxu0 0
        %1658 = vmatprep.subr.bf16.mxu0 0
        %1659 = vmatpush1.bf16.msra.mxu0 0
        %1660 = vmatprep.subr.bf16.mxu0 0
        %1661 = vmatpush1.bf16.msra.mxu0 0
        %1662 = vmatprep.subr.bf16.mxu0 %v1572
        %1663 = vmatpush1.bf16.msra.mxu0 %v1571
        %1664 = vmatprep.subr.bf16.mxu0 %v1570
        %1665 = vmatpush1.bf16.msra.mxu0 %v1569
        %1666 = vmatprep.subr.bf16.mxu0 %v1568
        %1667 = vmatpush1.bf16.msra.mxu0 %v1567
        %1668 = vmatprep.subr.bf16.mxu0 %v1566
        %1669 = vmatpush1.bf16.msra.mxu0 %v1565
        %1670 = vmatprep.subr.bf16.mxu0 0
        %1671 = vmatpush2.bf16.msra.mxu0 0
        %1672 = vmatprep.subr.bf16.mxu0 0
        %1673 = vmatpush2.bf16.msra.mxu0 0
        %1674 = vmatprep.subr.bf16.mxu0 0
        %1675 = vmatpush2.bf16.msra.mxu0 0
        %1676 = vmatprep.subr.bf16.mxu0 0
        %1677 = vmatpush2.bf16.msra.mxu0 0
        %1678 = vmatprep.subr.bf16.mxu0 0
        %1679 = vmatpush2.bf16.msra.mxu0 0
        %1680 = vmatprep.subr.bf16.mxu0 0
        %1681 = vmatpush2.bf16.msra.mxu0 0
        %1682 = vmatprep.subr.bf16.mxu0 0
        %1683 = vmatpush2.bf16.msra.mxu0 0
        %1684 = vmatprep.subr.bf16.mxu0 0
        %1685 = vmatpush2.bf16.msra.mxu0 0
        %1686 = vmatprep.mubr.bf16.mxu0 0
        %1687 = vmatmul.mubr.bf16.gmra.mxu0 %v1643
        %v1688 = vpop.f32.mrf.mxu0
        %v1689 = vadd.f32 %v1585, %v1688
        %v1690 = vpop.f32.mrf.mxu0
        %v1691 = vadd.f32 %v1585, %v1690
        %v1692 = vpop.f32.mrf.mxu0
        %v1693 = vadd.f32 %v1590, %v1692
        %v1694 = vpop.f32.mrf.mxu0
        %v1695 = vadd.f32 %v1590, %v1694
        %1696 = vmatprep.mubr.bf16.mxu0 0
        %1697 = vmatmul.mubr.bf16.gmra.mxu0 %v1646
        %v1698 = vpop.f32.mrf.mxu0
        %v1699 = vadd.f32 %v1595, %v1698
        %v1700 = vpop.f32.mrf.mxu0
        %v1701 = vadd.f32 %v1595, %v1700
        %v1702 = vpop.f32.mrf.mxu0
        %v1703 = vadd.f32 %v1600, %v1702
        %v1704 = vpop.f32.mrf.mxu0
        %v1705 = vadd.f32 %v1600, %v1704
        %1706 = vmatprep.mubr.bf16.mxu0 0
        %1707 = vmatmul.mubr.bf16.gmra.mxu0 %v1649
        %v1708 = vpop.f32.mrf.mxu0
        %v1709 = vadd.f32 %v1605, %v1708
        %v1710 = vpop.f32.mrf.mxu0
        %v1711 = vadd.f32 %v1605, %v1710
        %v1712 = vpop.f32.mrf.mxu0
        %v1713 = vadd.f32 %v1610, %v1712
        %v1714 = vpop.f32.mrf.mxu0
        %v1715 = vadd.f32 %v1610, %v1714
        %1716 = vmatprep.mubr.bf16.mxu0 0
        %1717 = vmatmul.mubr.bf16.gmra.mxu0 %v1652
        %v1718 = vpop.f32.mrf.mxu0
        %v1719 = vadd.f32 %v1615, %v1718
        %v1720 = vpop.f32.mrf.mxu0
        %v1721 = vadd.f32 %v1615, %v1720
        %v1722 = vpop.f32.mrf.mxu0
        %v1723 = vadd.f32 %v1620, %v1722
        %v1724 = vpop.f32.mrf.mxu0
        %v1725 = vadd.f32 %v1620, %v1724
        %1726 = vdwg.mxu0
        %v1727 = vmax.f32 %v1689, 0.0
        %v1728 = vmax.f32 %v1691, 0.0
        %v1729 = vmax.f32 %v1693, 0.0
        %v1730 = vmax.f32 %v1695, 0.0
        %v1731 = vmax.f32 %v1699, 0.0
        %v1732 = vmax.f32 %v1701, 0.0
        %v1733 = vmax.f32 %v1703, 0.0
        %v1734 = vmax.f32 %v1705, 0.0
        %v1735 = vmax.f32 %v1709, 0.0
        %v1736 = vmax.f32 %v1711, 0.0
        %v1737 = vmax.f32 %v1713, 0.0
        %v1738 = vmax.f32 %v1715, 0.0
        %v1739 = vmax.f32 %v1719, 0.0
        %v1740 = vmax.f32 %v1721, 0.0
        %v1741 = vmax.f32 %v1723, 0.0
        %v1742 = vmax.f32 %v1725, 0.0
        %s1743 = scalar_lea.vmem %s3, 224
        %v1744 = vld [vmem:[%s1743] sm:$0xf]
        %v1745 = vld [vmem:[%s1743 + $0x4] sm:$0xf]
        %v1746 = vld [vmem:[%s1743 + $0x8] sm:$0xf]
        %v1747 = vld [vmem:[%s1743 + $0xc] sm:$0xf]
        %v1748 = vld [vmem:[%s1743 + $0x10] sm:$0xf]
        %v1749 = vld [vmem:[%s1743 + $0x14] sm:$0xf]
        %v1750 = vld [vmem:[%s1743 + $0x18] sm:$0xf]
        %v1751 = vld [vmem:[%s1743 + $0x1c] sm:$0xf]
        %v1752 = vpack.c.bf16 %v1729, %v1727
        %v1753 = vpack.c.bf16 %v1730, %v1728
        %v1754 = vpack.c.bf16 %v1733, %v1731
        %v1755 = vpack.c.bf16 %v1734, %v1732
        %v1756 = vpack.c.bf16 %v1737, %v1735
        %v1757 = vpack.c.bf16 %v1738, %v1736
        %v1758 = vpack.c.bf16 %v1741, %v1739
        %v1759 = vpack.c.bf16 %v1742, %v1740
        %s1760 = scalar_lea.vmem %s4, 448
        %v1761 = vld [vmem:[%s1760] sm:$0xff]
        %v1762 = vld [vmem:[%s1760 + $0x8] sm:$0xff]
        %v1763 = vld [vmem:[%s1760 + $0x10] sm:$0xff]
        %v1764 = vld [vmem:[%s1760 + $0x18] sm:$0xff]
        %v1765 = vld [vmem:[%s1760 + $0x20] sm:$0xff]
        %v1766 = vld [vmem:[%s1760 + $0x28] sm:$0xff]
        %v1767 = vld [vmem:[%s1760 + $0x30] sm:$0xff]
        %v1768 = vld [vmem:[%s1760 + $0x38] sm:$0xff]
        %1770 = vset.pattern.permute.xlu0 0
        %1771 = vperm.xlu0 %1770, %v1761
        %v1772 = vpop.permute.xlu0 %1771
        %1775 = vset.pattern.permute.xlu0 0
        %1776 = vperm.xlu0 %1775, %v1762
        %v1777 = vpop.permute.xlu0 %1776
        %1780 = vset.pattern.permute.xlu0 0
        %1781 = vperm.xlu0 %1780, %v1763
        %v1782 = vpop.permute.xlu0 %1781
        %1785 = vset.pattern.permute.xlu0 0
        %1786 = vperm.xlu0 %1785, %v1764
        %v1787 = vpop.permute.xlu0 %1786
        %1790 = vset.pattern.permute.xlu0 0
        %1791 = vperm.xlu0 %1790, %v1765
        %v1792 = vpop.permute.xlu0 %1791
        %1795 = vset.pattern.permute.xlu0 0
        %1796 = vperm.xlu0 %1795, %v1766
        %v1797 = vpop.permute.xlu0 %1796
        %1800 = vset.pattern.permute.xlu0 0
        %1801 = vperm.xlu0 %1800, %v1767
        %v1802 = vpop.permute.xlu0 %1801
        %1805 = vset.pattern.permute.xlu0 0
        %1806 = vperm.xlu0 %1805, %v1768
        %v1807 = vpop.permute.xlu0 %1806
        %v1817 = vunpack.c.l.b16 %v1744
        %v1818 = vunpack.c.l.b16 %v1745
        %v1819 = vunpack.c.l.b16 %v1746
        %v1820 = vunpack.c.l.b16 %v1747
        %v1821 = vunpack.c.l.b16 %v1748
        %v1822 = vunpack.c.l.b16 %v1749
        %v1823 = vunpack.c.l.b16 %v1750
        %v1824 = vunpack.c.l.b16 %v1751
        %v1825 = vpack.c.b16 %v1818, %v1817
        %v1826 = vpack.c.b16 %v1820, %v1819
        %v1827 = vpack.c.b16 %v1822, %v1821
        %v1828 = vpack.c.b16 %v1824, %v1823
        %v1830 = vsel %vm519, %v1825, 0
        %v1833 = vsel %vm519, %v1826, 0
        %v1836 = vsel %vm519, %v1827, 0
        %v1839 = vsel %vm519, %v1828, 0
        %1841 = vmatprep.subr.bf16.mxu0 0
        %1842 = vmatpush1.bf16.msra.mxu0 0
        %1843 = vmatprep.subr.bf16.mxu0 0
        %1844 = vmatpush1.bf16.msra.mxu0 0
        %1845 = vmatprep.subr.bf16.mxu0 0
        %1846 = vmatpush1.bf16.msra.mxu0 0
        %1847 = vmatprep.subr.bf16.mxu0 0
        %1848 = vmatpush1.bf16.msra.mxu0 0
        %1849 = vmatprep.subr.bf16.mxu0 %v1759
        %1850 = vmatpush1.bf16.msra.mxu0 %v1758
        %1851 = vmatprep.subr.bf16.mxu0 %v1757
        %1852 = vmatpush1.bf16.msra.mxu0 %v1756
        %1853 = vmatprep.subr.bf16.mxu0 %v1755
        %1854 = vmatpush1.bf16.msra.mxu0 %v1754
        %1855 = vmatprep.subr.bf16.mxu0 %v1753
        %1856 = vmatpush1.bf16.msra.mxu0 %v1752
        %1857 = vmatprep.subr.bf16.mxu0 0
        %1858 = vmatpush2.bf16.msra.mxu0 0
        %1859 = vmatprep.subr.bf16.mxu0 0
        %1860 = vmatpush2.bf16.msra.mxu0 0
        %1861 = vmatprep.subr.bf16.mxu0 0
        %1862 = vmatpush2.bf16.msra.mxu0 0
        %1863 = vmatprep.subr.bf16.mxu0 0
        %1864 = vmatpush2.bf16.msra.mxu0 0
        %1865 = vmatprep.subr.bf16.mxu0 0
        %1866 = vmatpush2.bf16.msra.mxu0 0
        %1867 = vmatprep.subr.bf16.mxu0 0
        %1868 = vmatpush2.bf16.msra.mxu0 0
        %1869 = vmatprep.subr.bf16.mxu0 0
        %1870 = vmatpush2.bf16.msra.mxu0 0
        %1871 = vmatprep.subr.bf16.mxu0 0
        %1872 = vmatpush2.bf16.msra.mxu0 0
        %1873 = vmatprep.mubr.bf16.mxu0 0
        %1874 = vmatmul.mubr.bf16.gmra.mxu0 %v1830
        %v1875 = vpop.f32.mrf.mxu0
        %v1876 = vadd.f32 %v1772, %v1875
        %v1877 = vpop.f32.mrf.mxu0
        %v1878 = vadd.f32 %v1772, %v1877
        %v1879 = vpop.f32.mrf.mxu0
        %v1880 = vadd.f32 %v1777, %v1879
        %v1881 = vpop.f32.mrf.mxu0
        %v1882 = vadd.f32 %v1777, %v1881
        %1883 = vmatprep.mubr.bf16.mxu0 0
        %1884 = vmatmul.mubr.bf16.gmra.mxu0 %v1833
        %v1885 = vpop.f32.mrf.mxu0
        %v1886 = vadd.f32 %v1782, %v1885
        %v1887 = vpop.f32.mrf.mxu0
        %v1888 = vadd.f32 %v1782, %v1887
        %v1889 = vpop.f32.mrf.mxu0
        %v1890 = vadd.f32 %v1787, %v1889
        %v1891 = vpop.f32.mrf.mxu0
        %v1892 = vadd.f32 %v1787, %v1891
        %1893 = vmatprep.mubr.bf16.mxu0 0
        %1894 = vmatmul.mubr.bf16.gmra.mxu0 %v1836
        %v1895 = vpop.f32.mrf.mxu0
        %v1896 = vadd.f32 %v1792, %v1895
        %v1897 = vpop.f32.mrf.mxu0
        %v1898 = vadd.f32 %v1792, %v1897
        %v1899 = vpop.f32.mrf.mxu0
        %v1900 = vadd.f32 %v1797, %v1899
        %v1901 = vpop.f32.mrf.mxu0
        %v1902 = vadd.f32 %v1797, %v1901
        %1903 = vmatprep.mubr.bf16.mxu0 0
        %1904 = vmatmul.mubr.bf16.gmra.mxu0 %v1839
        %v1905 = vpop.f32.mrf.mxu0
        %v1906 = vadd.f32 %v1802, %v1905
        %v1907 = vpop.f32.mrf.mxu0
        %v1908 = vadd.f32 %v1802, %v1907
        %v1909 = vpop.f32.mrf.mxu0
        %v1910 = vadd.f32 %v1807, %v1909
        %v1911 = vpop.f32.mrf.mxu0
        %v1912 = vadd.f32 %v1807, %v1911
        %1913 = vdwg.mxu0
        %v1914 = vmax.f32 %v1876, 0.0
        %v1915 = vmax.f32 %v1878, 0.0
        %v1916 = vmax.f32 %v1880, 0.0
        %v1917 = vmax.f32 %v1882, 0.0
        %v1918 = vmax.f32 %v1886, 0.0
        %v1919 = vmax.f32 %v1888, 0.0
        %v1920 = vmax.f32 %v1890, 0.0
        %v1921 = vmax.f32 %v1892, 0.0
        %v1922 = vmax.f32 %v1896, 0.0
        %v1923 = vmax.f32 %v1898, 0.0
        %v1924 = vmax.f32 %v1900, 0.0
        %v1925 = vmax.f32 %v1902, 0.0
        %v1926 = vmax.f32 %v1906, 0.0
        %v1927 = vmax.f32 %v1908, 0.0
        %v1928 = vmax.f32 %v1910, 0.0
        %v1929 = vmax.f32 %v1912, 0.0
        %s1930 = scalar_lea.vmem %s3, 256
        %v1931 = vld [vmem:[%s1930] sm:$0xf]
        %v1932 = vld [vmem:[%s1930 + $0x4] sm:$0xf]
        %v1933 = vld [vmem:[%s1930 + $0x8] sm:$0xf]
        %v1934 = vld [vmem:[%s1930 + $0xc] sm:$0xf]
        %v1935 = vld [vmem:[%s1930 + $0x10] sm:$0xf]
        %v1936 = vld [vmem:[%s1930 + $0x14] sm:$0xf]
        %v1937 = vld [vmem:[%s1930 + $0x18] sm:$0xf]
        %v1938 = vld [vmem:[%s1930 + $0x1c] sm:$0xf]
        %v1939 = vpack.c.bf16 %v1916, %v1914
        %v1940 = vpack.c.bf16 %v1917, %v1915
        %v1941 = vpack.c.bf16 %v1920, %v1918
        %v1942 = vpack.c.bf16 %v1921, %v1919
        %v1943 = vpack.c.bf16 %v1924, %v1922
        %v1944 = vpack.c.bf16 %v1925, %v1923
        %v1945 = vpack.c.bf16 %v1928, %v1926
        %v1946 = vpack.c.bf16 %v1929, %v1927
        %s1947 = scalar_lea.vmem %s4, 512
        %v1948 = vld [vmem:[%s1947] sm:$0xff]
        %v1949 = vld [vmem:[%s1947 + $0x8] sm:$0xff]
        %v1950 = vld [vmem:[%s1947 + $0x10] sm:$0xff]
        %v1951 = vld [vmem:[%s1947 + $0x18] sm:$0xff]
        %v1952 = vld [vmem:[%s1947 + $0x20] sm:$0xff]
        %v1953 = vld [vmem:[%s1947 + $0x28] sm:$0xff]
        %v1954 = vld [vmem:[%s1947 + $0x30] sm:$0xff]
        %v1955 = vld [vmem:[%s1947 + $0x38] sm:$0xff]
        %1957 = vset.pattern.permute.xlu0 0
        %1958 = vperm.xlu0 %1957, %v1948
        %v1959 = vpop.permute.xlu0 %1958
        %1962 = vset.pattern.permute.xlu0 0
        %1963 = vperm.xlu0 %1962, %v1949
        %v1964 = vpop.permute.xlu0 %1963
        %1967 = vset.pattern.permute.xlu0 0
        %1968 = vperm.xlu0 %1967, %v1950
        %v1969 = vpop.permute.xlu0 %1968
        %1972 = vset.pattern.permute.xlu0 0
        %1973 = vperm.xlu0 %1972, %v1951
        %v1974 = vpop.permute.xlu0 %1973
        %1977 = vset.pattern.permute.xlu0 0
        %1978 = vperm.xlu0 %1977, %v1952
        %v1979 = vpop.permute.xlu0 %1978
        %1982 = vset.pattern.permute.xlu0 0
        %1983 = vperm.xlu0 %1982, %v1953
        %v1984 = vpop.permute.xlu0 %1983
        %1987 = vset.pattern.permute.xlu0 0
        %1988 = vperm.xlu0 %1987, %v1954
        %v1989 = vpop.permute.xlu0 %1988
        %1992 = vset.pattern.permute.xlu0 0
        %1993 = vperm.xlu0 %1992, %v1955
        %v1994 = vpop.permute.xlu0 %1993
        %v2004 = vunpack.c.l.b16 %v1931
        %v2005 = vunpack.c.l.b16 %v1932
        %v2006 = vunpack.c.l.b16 %v1933
        %v2007 = vunpack.c.l.b16 %v1934
        %v2008 = vunpack.c.l.b16 %v1935
        %v2009 = vunpack.c.l.b16 %v1936
        %v2010 = vunpack.c.l.b16 %v1937
        %v2011 = vunpack.c.l.b16 %v1938
        %v2012 = vpack.c.b16 %v2005, %v2004
        %v2013 = vpack.c.b16 %v2007, %v2006
        %v2014 = vpack.c.b16 %v2009, %v2008
        %v2015 = vpack.c.b16 %v2011, %v2010
        %v2017 = vsel %vm519, %v2012, 0
        %v2020 = vsel %vm519, %v2013, 0
        %v2023 = vsel %vm519, %v2014, 0
        %v2026 = vsel %vm519, %v2015, 0
        %2028 = vmatprep.subr.bf16.mxu0 0
        %2029 = vmatpush1.bf16.msra.mxu0 0
        %2030 = vmatprep.subr.bf16.mxu0 0
        %2031 = vmatpush1.bf16.msra.mxu0 0
        %2032 = vmatprep.subr.bf16.mxu0 0
        %2033 = vmatpush1.bf16.msra.mxu0 0
        %2034 = vmatprep.subr.bf16.mxu0 0
        %2035 = vmatpush1.bf16.msra.mxu0 0
        %2036 = vmatprep.subr.bf16.mxu0 %v1946
        %2037 = vmatpush1.bf16.msra.mxu0 %v1945
        %2038 = vmatprep.subr.bf16.mxu0 %v1944
        %2039 = vmatpush1.bf16.msra.mxu0 %v1943
        %2040 = vmatprep.subr.bf16.mxu0 %v1942
        %2041 = vmatpush1.bf16.msra.mxu0 %v1941
        %2042 = vmatprep.subr.bf16.mxu0 %v1940
        %2043 = vmatpush1.bf16.msra.mxu0 %v1939
        %2044 = vmatprep.subr.bf16.mxu0 0
        %2045 = vmatpush2.bf16.msra.mxu0 0
        %2046 = vmatprep.subr.bf16.mxu0 0
        %2047 = vmatpush2.bf16.msra.mxu0 0
        %2048 = vmatprep.subr.bf16.mxu0 0
        %2049 = vmatpush2.bf16.msra.mxu0 0
        %2050 = vmatprep.subr.bf16.mxu0 0
        %2051 = vmatpush2.bf16.msra.mxu0 0
        %2052 = vmatprep.subr.bf16.mxu0 0
        %2053 = vmatpush2.bf16.msra.mxu0 0
        %2054 = vmatprep.subr.bf16.mxu0 0
        %2055 = vmatpush2.bf16.msra.mxu0 0
        %2056 = vmatprep.subr.bf16.mxu0 0
        %2057 = vmatpush2.bf16.msra.mxu0 0
        %2058 = vmatprep.subr.bf16.mxu0 0
        %2059 = vmatpush2.bf16.msra.mxu0 0
        %2060 = vmatprep.mubr.bf16.mxu0 0
        %2061 = vmatmul.mubr.bf16.gmra.mxu0 %v2017
        %v2062 = vpop.f32.mrf.mxu0
        %v2063 = vadd.f32 %v1959, %v2062
        %v2064 = vpop.f32.mrf.mxu0
        %v2065 = vadd.f32 %v1959, %v2064
        %v2066 = vpop.f32.mrf.mxu0
        %v2067 = vadd.f32 %v1964, %v2066
        %v2068 = vpop.f32.mrf.mxu0
        %v2069 = vadd.f32 %v1964, %v2068
        %2070 = vmatprep.mubr.bf16.mxu0 0
        %2071 = vmatmul.mubr.bf16.gmra.mxu0 %v2020
        %v2072 = vpop.f32.mrf.mxu0
        %v2073 = vadd.f32 %v1969, %v2072
        %v2074 = vpop.f32.mrf.mxu0
        %v2075 = vadd.f32 %v1969, %v2074
        %v2076 = vpop.f32.mrf.mxu0
        %v2077 = vadd.f32 %v1974, %v2076
        %v2078 = vpop.f32.mrf.mxu0
        %v2079 = vadd.f32 %v1974, %v2078
        %2080 = vmatprep.mubr.bf16.mxu0 0
        %2081 = vmatmul.mubr.bf16.gmra.mxu0 %v2023
        %v2082 = vpop.f32.mrf.mxu0
        %v2083 = vadd.f32 %v1979, %v2082
        %v2084 = vpop.f32.mrf.mxu0
        %v2085 = vadd.f32 %v1979, %v2084
        %v2086 = vpop.f32.mrf.mxu0
        %v2087 = vadd.f32 %v1984, %v2086
        %v2088 = vpop.f32.mrf.mxu0
        %v2089 = vadd.f32 %v1984, %v2088
        %2090 = vmatprep.mubr.bf16.mxu0 0
        %2091 = vmatmul.mubr.bf16.gmra.mxu0 %v2026
        %v2092 = vpop.f32.mrf.mxu0
        %v2093 = vadd.f32 %v1989, %v2092
        %v2094 = vpop.f32.mrf.mxu0
        %v2095 = vadd.f32 %v1989, %v2094
        %v2096 = vpop.f32.mrf.mxu0
        %v2097 = vadd.f32 %v1994, %v2096
        %v2098 = vpop.f32.mrf.mxu0
        %v2099 = vadd.f32 %v1994, %v2098
        %2100 = vdwg.mxu0
        %v2101 = vmax.f32 %v2063, 0.0
        %v2102 = vmax.f32 %v2065, 0.0
        %v2103 = vmax.f32 %v2067, 0.0
        %v2104 = vmax.f32 %v2069, 0.0
        %v2105 = vmax.f32 %v2073, 0.0
        %v2106 = vmax.f32 %v2075, 0.0
        %v2107 = vmax.f32 %v2077, 0.0
        %v2108 = vmax.f32 %v2079, 0.0
        %v2109 = vmax.f32 %v2083, 0.0
        %v2110 = vmax.f32 %v2085, 0.0
        %v2111 = vmax.f32 %v2087, 0.0
        %v2112 = vmax.f32 %v2089, 0.0
        %v2113 = vmax.f32 %v2093, 0.0
        %v2114 = vmax.f32 %v2095, 0.0
        %v2115 = vmax.f32 %v2097, 0.0
        %v2116 = vmax.f32 %v2099, 0.0
        %s2117 = scalar_lea.vmem %s3, 288
        %v2118 = vld [vmem:[%s2117] sm:$0xf]
        %v2119 = vld [vmem:[%s2117 + $0x4] sm:$0xf]
        %v2120 = vld [vmem:[%s2117 + $0x8] sm:$0xf]
        %v2121 = vld [vmem:[%s2117 + $0xc] sm:$0xf]
        %v2122 = vld [vmem:[%s2117 + $0x10] sm:$0xf]
        %v2123 = vld [vmem:[%s2117 + $0x14] sm:$0xf]
        %v2124 = vld [vmem:[%s2117 + $0x18] sm:$0xf]
        %v2125 = vld [vmem:[%s2117 + $0x1c] sm:$0xf]
        %v2126 = vpack.c.bf16 %v2103, %v2101
        %v2127 = vpack.c.bf16 %v2104, %v2102
        %v2128 = vpack.c.bf16 %v2107, %v2105
        %v2129 = vpack.c.bf16 %v2108, %v2106
        %v2130 = vpack.c.bf16 %v2111, %v2109
        %v2131 = vpack.c.bf16 %v2112, %v2110
        %v2132 = vpack.c.bf16 %v2115, %v2113
        %v2133 = vpack.c.bf16 %v2116, %v2114
        %s2134 = scalar_lea.vmem %s4, 576
        %v2135 = vld [vmem:[%s2134] sm:$0xff]
        %v2136 = vld [vmem:[%s2134 + $0x8] sm:$0xff]
        %v2137 = vld [vmem:[%s2134 + $0x10] sm:$0xff]
        %v2138 = vld [vmem:[%s2134 + $0x18] sm:$0xff]
        %v2139 = vld [vmem:[%s2134 + $0x20] sm:$0xff]
        %v2140 = vld [vmem:[%s2134 + $0x28] sm:$0xff]
        %v2141 = vld [vmem:[%s2134 + $0x30] sm:$0xff]
        %v2142 = vld [vmem:[%s2134 + $0x38] sm:$0xff]
        %2144 = vset.pattern.permute.xlu0 0
        %2145 = vperm.xlu0 %2144, %v2135
        %v2146 = vpop.permute.xlu0 %2145
        %2149 = vset.pattern.permute.xlu0 0
        %2150 = vperm.xlu0 %2149, %v2136
        %v2151 = vpop.permute.xlu0 %2150
        %2154 = vset.pattern.permute.xlu0 0
        %2155 = vperm.xlu0 %2154, %v2137
        %v2156 = vpop.permute.xlu0 %2155
        %2159 = vset.pattern.permute.xlu0 0
        %2160 = vperm.xlu0 %2159, %v2138
        %v2161 = vpop.permute.xlu0 %2160
        %2164 = vset.pattern.permute.xlu0 0
        %2165 = vperm.xlu0 %2164, %v2139
        %v2166 = vpop.permute.xlu0 %2165
        %2169 = vset.pattern.permute.xlu0 0
        %2170 = vperm.xlu0 %2169, %v2140
        %v2171 = vpop.permute.xlu0 %2170
        %2174 = vset.pattern.permute.xlu0 0
        %2175 = vperm.xlu0 %2174, %v2141
        %v2176 = vpop.permute.xlu0 %2175
        %2179 = vset.pattern.permute.xlu0 0
        %2180 = vperm.xlu0 %2179, %v2142
        %v2181 = vpop.permute.xlu0 %2180
        %v2191 = vunpack.c.l.b16 %v2118
        %v2192 = vunpack.c.l.b16 %v2119
        %v2193 = vunpack.c.l.b16 %v2120
        %v2194 = vunpack.c.l.b16 %v2121
        %v2195 = vunpack.c.l.b16 %v2122
        %v2196 = vunpack.c.l.b16 %v2123
        %v2197 = vunpack.c.l.b16 %v2124
        %v2198 = vunpack.c.l.b16 %v2125
        %v2199 = vpack.c.b16 %v2192, %v2191
        %v2200 = vpack.c.b16 %v2194, %v2193
        %v2201 = vpack.c.b16 %v2196, %v2195
        %v2202 = vpack.c.b16 %v2198, %v2197
        %v2204 = vsel %vm519, %v2199, 0
        %v2207 = vsel %vm519, %v2200, 0
        %v2210 = vsel %vm519, %v2201, 0
        %v2213 = vsel %vm519, %v2202, 0
        %2215 = vmatprep.subr.bf16.mxu0 0
        %2216 = vmatpush1.bf16.msra.mxu0 0
        %2217 = vmatprep.subr.bf16.mxu0 0
        %2218 = vmatpush1.bf16.msra.mxu0 0
        %2219 = vmatprep.subr.bf16.mxu0 0
        %2220 = vmatpush1.bf16.msra.mxu0 0
        %2221 = vmatprep.subr.bf16.mxu0 0
        %2222 = vmatpush1.bf16.msra.mxu0 0
        %2223 = vmatprep.subr.bf16.mxu0 %v2133
        %2224 = vmatpush1.bf16.msra.mxu0 %v2132
        %2225 = vmatprep.subr.bf16.mxu0 %v2131
        %2226 = vmatpush1.bf16.msra.mxu0 %v2130
        %2227 = vmatprep.subr.bf16.mxu0 %v2129
        %2228 = vmatpush1.bf16.msra.mxu0 %v2128
        %2229 = vmatprep.subr.bf16.mxu0 %v2127
        %2230 = vmatpush1.bf16.msra.mxu0 %v2126
        %2231 = vmatprep.subr.bf16.mxu0 0
        %2232 = vmatpush2.bf16.msra.mxu0 0
        %2233 = vmatprep.subr.bf16.mxu0 0
        %2234 = vmatpush2.bf16.msra.mxu0 0
        %2235 = vmatprep.subr.bf16.mxu0 0
        %2236 = vmatpush2.bf16.msra.mxu0 0
        %2237 = vmatprep.subr.bf16.mxu0 0
        %2238 = vmatpush2.bf16.msra.mxu0 0
        %2239 = vmatprep.subr.bf16.mxu0 0
        %2240 = vmatpush2.bf16.msra.mxu0 0
        %2241 = vmatprep.subr.bf16.mxu0 0
        %2242 = vmatpush2.bf16.msra.mxu0 0
        %2243 = vmatprep.subr.bf16.mxu0 0
        %2244 = vmatpush2.bf16.msra.mxu0 0
        %2245 = vmatprep.subr.bf16.mxu0 0
        %2246 = vmatpush2.bf16.msra.mxu0 0
        %2247 = vmatprep.mubr.bf16.mxu0 0
        %2248 = vmatmul.mubr.bf16.gmra.mxu0 %v2204
        %v2249 = vpop.f32.mrf.mxu0
        %v2250 = vadd.f32 %v2146, %v2249
        %v2251 = vpop.f32.mrf.mxu0
        %v2252 = vadd.f32 %v2146, %v2251
        %v2253 = vpop.f32.mrf.mxu0
        %v2254 = vadd.f32 %v2151, %v2253
        %v2255 = vpop.f32.mrf.mxu0
        %v2256 = vadd.f32 %v2151, %v2255
        %2257 = vmatprep.mubr.bf16.mxu0 0
        %2258 = vmatmul.mubr.bf16.gmra.mxu0 %v2207
        %v2259 = vpop.f32.mrf.mxu0
        %v2260 = vadd.f32 %v2156, %v2259
        %v2261 = vpop.f32.mrf.mxu0
        %v2262 = vadd.f32 %v2156, %v2261
        %v2263 = vpop.f32.mrf.mxu0
        %v2264 = vadd.f32 %v2161, %v2263
        %v2265 = vpop.f32.mrf.mxu0
        %v2266 = vadd.f32 %v2161, %v2265
        %2267 = vmatprep.mubr.bf16.mxu0 0
        %2268 = vmatmul.mubr.bf16.gmra.mxu0 %v2210
        %v2269 = vpop.f32.mrf.mxu0
        %v2270 = vadd.f32 %v2166, %v2269
        %v2271 = vpop.f32.mrf.mxu0
        %v2272 = vadd.f32 %v2166, %v2271
        %v2273 = vpop.f32.mrf.mxu0
        %v2274 = vadd.f32 %v2171, %v2273
        %v2275 = vpop.f32.mrf.mxu0
        %v2276 = vadd.f32 %v2171, %v2275
        %2277 = vmatprep.mubr.bf16.mxu0 0
        %2278 = vmatmul.mubr.bf16.gmra.mxu0 %v2213
        %v2279 = vpop.f32.mrf.mxu0
        %v2280 = vadd.f32 %v2176, %v2279
        %v2281 = vpop.f32.mrf.mxu0
        %v2282 = vadd.f32 %v2176, %v2281
        %v2283 = vpop.f32.mrf.mxu0
        %v2284 = vadd.f32 %v2181, %v2283
        %v2285 = vpop.f32.mrf.mxu0
        %v2286 = vadd.f32 %v2181, %v2285
        %2287 = vdwg.mxu0
        %v2288 = vmax.f32 %v2250, 0.0
        %v2289 = vmax.f32 %v2252, 0.0
        %v2290 = vmax.f32 %v2254, 0.0
        %v2291 = vmax.f32 %v2256, 0.0
        %v2292 = vmax.f32 %v2260, 0.0
        %v2293 = vmax.f32 %v2262, 0.0
        %v2294 = vmax.f32 %v2264, 0.0
        %v2295 = vmax.f32 %v2266, 0.0
        %v2296 = vmax.f32 %v2270, 0.0
        %v2297 = vmax.f32 %v2272, 0.0
        %v2298 = vmax.f32 %v2274, 0.0
        %v2299 = vmax.f32 %v2276, 0.0
        %v2300 = vmax.f32 %v2280, 0.0
        %v2301 = vmax.f32 %v2282, 0.0
        %v2302 = vmax.f32 %v2284, 0.0
        %v2303 = vmax.f32 %v2286, 0.0
        %v2304 = vld [vmem:[%s5] sm:$0x1]
        %v2305 = vpack.c.bf16 %v2290, %v2288
        %v2306 = vpack.c.bf16 %v2291, %v2289
        %v2307 = vpack.c.bf16 %v2294, %v2292
        %v2308 = vpack.c.bf16 %v2295, %v2293
        %v2309 = vpack.c.bf16 %v2298, %v2296
        %v2310 = vpack.c.bf16 %v2299, %v2297
        %v2311 = vpack.c.bf16 %v2302, %v2300
        %v2312 = vpack.c.bf16 %v2303, %v2301
        %s2313 = sld [smem:[#allocation2]]
        %v2314 = vstv %s2313
        %v2316 = vsel %vm519, %v2304, 0
        %2318 = vmatprep.subr.bf16.mxu0 0
        %2319 = vmatpush1.bf16.msra.mxu0 0
        %2320 = vmatprep.subr.bf16.mxu0 0
        %2321 = vmatpush1.bf16.msra.mxu0 0
        %2322 = vmatprep.subr.bf16.mxu0 0
        %2323 = vmatpush1.bf16.msra.mxu0 0
        %2324 = vmatprep.subr.bf16.mxu0 0
        %2325 = vmatpush1.bf16.msra.mxu0 0
        %2326 = vmatprep.subr.bf16.mxu0 %v2312
        %2327 = vmatpush1.bf16.msra.mxu0 %v2311
        %2328 = vmatprep.subr.bf16.mxu0 %v2310
        %2329 = vmatpush1.bf16.msra.mxu0 %v2309
        %2330 = vmatprep.subr.bf16.mxu0 %v2308
        %2331 = vmatpush1.bf16.msra.mxu0 %v2307
        %2332 = vmatprep.subr.bf16.mxu0 %v2306
        %2333 = vmatpush1.bf16.msra.mxu0 %v2305
        %2334 = vmatprep.subr.bf16.mxu0 0
        %2335 = vmatpush2.bf16.msra.mxu0 0
        %2336 = vmatprep.subr.bf16.mxu0 0
        %2337 = vmatpush2.bf16.msra.mxu0 0
        %2338 = vmatprep.subr.bf16.mxu0 0
        %2339 = vmatpush2.bf16.msra.mxu0 0
        %2340 = vmatprep.subr.bf16.mxu0 0
        %2341 = vmatpush2.bf16.msra.mxu0 0
        %2342 = vmatprep.subr.bf16.mxu0 0
        %2343 = vmatpush2.bf16.msra.mxu0 0
        %2344 = vmatprep.subr.bf16.mxu0 0
        %2345 = vmatpush2.bf16.msra.mxu0 0
        %2346 = vmatprep.subr.bf16.mxu0 0
        %2347 = vmatpush2.bf16.msra.mxu0 0
        %2348 = vmatprep.subr.bf16.mxu0 0
        %2349 = vmatpush2.bf16.msra.mxu0 0
        %2350 = vmatprep.mubr.bf16.mxu0 0
        %2351 = vmatmul.mubr.bf16.gmra.mxu0 %v2316
        %v2352 = vpop.f32.mrf.mxu0
        %v2353 = vadd.f32 %v2314, %v2352
        %v2354 = vpop.f32.mrf.mxu0
        %v2355 = vadd.f32 %v2314, %v2354
        %v2356 = vpop.f32.mrf.mxu0
        %v2357 = vpop.f32.mrf.mxu0
        %2358 = vdwg.mxu0
        %v2361 = vcombine.low %v2353, %v2355
        %v2363 = vunpack.c.l.s4 1966171168
        %v2364 = vunpack.c.0.s8 %v2363
        %v2365 = vlaneseq
        %v2366 = vshrl.u32 %v2365, 7
        %v2367 = vsub.s32 %v2364, %v2366
        %v2368 = vrot.slane %v2361, %v2367
        %v2370 = vunpack.c.l.s4 1966171168
        %v2371 = vunpack.c.0.s8 %v2370
        %v2372 = vlaneseq
        %v2373 = vshrl.u32 %v2372, 7
        %v2374 = vsub.s32 %v2371, %v2373
        %v2375 = vrot.slane %v2368, %v2374
        %v2377 = vlaneseq
        %vm2378 = vcmp.ge.s32.totalorder %v2377, 0
        %vm2379 = vcmp.lt.s32.totalorder %v2377, 256
        %vm2380 = vmand %vm2378, %vm2379
        %2381 = vst.msk [vmem:[%s271] sm:$0x3] %vm2380, %v2375
        %s2382 = sand.u32 %s182, 1
        %s2383 = scalar_lea.sflag [#allocation4], %s2382
        %s2384 = sand.u32 %s182, 1
        %s2385 = smul.addr %s2384, 2
        %s2386 = scalar_lea.vmem [#allocation3], %s2385
        // Predicated region
        $region49: #{tpu_custom_call.1} parent=47 // pred_check
          %p2387 = pneg %p192
        $region50: #{tpu_custom_call.1} parent=47 // pred_check_branch
          %2389 = sbr.rel (%p2387) target = $region52
        $region51: #{tpu_custom_call.1} parent=47 // pred_region
          %s2390 = smul.u32 2, %s22
          %s2392 = ssub.s32 32, 32
          %2393 = vsyncadd %s2383, %s2392
          %s2394 = smul.addr %s2390, 16
          %s2395 = scalar_lea.hbm %s7, %s2394
          %s2397 = sshll.u32 %s2386, 4
          %s2398 = int_to_ptr.vmem [resolvable:$true] %s2397
          %2400 = dma.vmem_to_hbm [thread:$0]  %s2398, 32, %s2395, %s2383
        $region52: #{tpu_custom_call.1} parent=47 // pred_fallthru
          _
      $region48: #{tpu_custom_call.1} parent=5 // pred_fallthru
        _
      %p2401 = scmp.le.s32.totalorder 2, %s17
      // Predicated region
      $region53: #{tpu_custom_call.1} parent=5 // pred_check
        %p2402 = pneg %p2401
      $region54: #{tpu_custom_call.1} parent=5 // pred_check_branch
        %2404 = sbr.rel (%p2402) target = $region56
      $region55: #{tpu_custom_call.1} parent=5 // pred_region
        %s2405 = ssub.s32 %s17, 2
        // Predicated region
        $region57: #{tpu_custom_call.1} parent=55 // pred_check
          %p2406 = pneg %p198
        $region58: #{tpu_custom_call.1} parent=55 // pred_check_branch
          %2408 = sbr.rel (%p2406) target = $region60
        $region59: #{tpu_custom_call.1} parent=55 // pred_region
          %s2409 = sand.u32 %s183, 1
          %s2410 = scalar_lea.sflag [#allocation4], %s2409
          %s2411 = sand.u32 %s183, 1
          %s2412 = smul.addr %s2411, 2
          %s2413 = scalar_lea.vmem [#allocation3], %s2412
          %2414 = dma.done %s2410, 32
        $region60: #{tpu_custom_call.1} parent=55 // pred_fallthru
          _
      $region56: #{tpu_custom_call.1} parent=5 // pred_fallthru
        _
    $region6: #{tpu_custom_call.1} parent=1 // loop_footer
      %s21 = sadd.s32 1, %s17
    $region7: #{tpu_custom_call.1} parent=1 // loop_footer_branch
      %16 = sbr.rel target = $region3
    $region8: #{tpu_custom_call.1} parent=1 // loop_exit
      _
    %2415 = vsyncpa [#allocation4], 1
    %s2416 = scalar_lea.sflag [#allocation4], 1
    %2417 = vsyncpa %s2416, 1

</llo_original>
